<compile_context>
chip_gen: v6e
topology: v6e:2x2x1
jax: 0.10.0
libtpu: 0.0.40
codegen_flags: <defaults>
</compile_context>

<pallas_src>
import functools

import jax
import jax.numpy as jnp
from jax.experimental import pallas as pl
from jax.experimental.pallas import tpu as pltpu

_LANE = 128
_SUBLANE = 8
_MXU_ROWS = 256  # target M rows per big matmul (v6e/v7x MXU height)


def _round_up(x, m):
    return (x + m - 1) // m * m


def _lstm_fc_kernel(emb_ref, w_ih_hbm, w_hh_hbm, b_g_ref, w_fc_t_ref, b_fc_ref,
                    out_ref,
                    w_ih_vmem, w_hh_vmem, xproj_ref, hs_ref, h_ref, c_ref,
                    *, t_blk, b_pad, unroll):
    """One (T-block, V-tile) grid step.

    emb_ref:    (T_blk*B_pad, E_pad)   bf16  pipelined (time-major flat rows)
    w_ih_hbm:   (E_pad, 4H_pad)        bf16  ANY (HBM), copied once to w_ih_vmem
    w_hh_hbm:   (H_pad, 4H_pad)        bf16  ANY (HBM), copied once to w_hh_vmem
    b_g_ref:    (1, 4H_pad)            f32   (b_ih + b_hh, gate order [i,f,g,o])
    w_fc_t_ref: (H_pad, v_blk)         bf16  pipelined V tile
    b_fc_ref:   (1, v_blk)             f32   pipelined V tile
    out_ref:    (T_blk*B_pad, v_blk)   f32
    scratch:    resident weights, xproj (f32), hs slab (bf16), h (bf16), c (f32)
    """
    h_pad = w_hh_vmem.shape[0]
    t_idx = pl.program_id(0)
    v_idx = pl.program_id(1)

    @pl.when((t_idx == 0) & (v_idx == 0))
    def _init():
        # One-time weight residency: constant-index weights DMA'd HBM -> VMEM once
        # for the whole grid (avoids double-buffered re-DMA of constant blocks).
        pltpu.sync_copy(w_ih_hbm, w_ih_vmem)
        pltpu.sync_copy(w_hh_hbm, w_hh_vmem)
        h_ref[...] = jnp.zeros_like(h_ref)
        c_ref[...] = jnp.zeros_like(c_ref)

    @pl.when(v_idx == 0)
    def _recurrence():
        # Input projection for the whole T-block: one big MXU matmul (bf16 -> f32 acc).
        xproj_ref[...] = (
            jnp.dot(emb_ref[...], w_ih_vmem[...],
                    preferred_element_type=jnp.float32)
            + b_g_ref[...]
        )

        w_hh_t = w_hh_vmem[...]  # (H_pad, 4H_pad) bf16, resident across the loop

        def step(t, carry):
            h, c = carry  # h: bf16 (B_pad, H_pad), c: f32 (B_pad, H_pad)
            rows = pl.ds(pl.multiple_of(t * b_pad, b_pad), b_pad)
            g = xproj_ref[rows, :] + jnp.dot(
                h, w_hh_t, preferred_element_type=jnp.float32)
            # Sigmoid only on the contiguous [i,f] and [o] slices, tanh on [g].
            if_g = jax.nn.sigmoid(g[:, : 2 * h_pad])
            o_g = jax.nn.sigmoid(g[:, 3 * h_pad:])
            g_g = jnp.tanh(g[:, 2 * h_pad: 3 * h_pad])
            c_new = if_g[:, h_pad:] * c + if_g[:, :h_pad] * g_g
            h_new = (o_g * jnp.tanh(c_new)).astype(jnp.bfloat16)
            hs_ref[rows, :] = h_new
            return (h_new, c_new)

        h_fin, c_fin = jax.lax.fori_loop(
            0, t_blk, step, (h_ref[...], c_ref[...]), unroll=unroll)
        h_ref[...] = h_fin
        c_ref[...] = c_fin

    # FC for this (T-block, V-tile): hoisted out of the recurrence.
    out_ref[...] = (
        jnp.dot(hs_ref[...], w_fc_t_ref[...], preferred_element_type=jnp.float32)
        + b_fc_ref[...]
    ).astype(out_ref.dtype)


def _pad_gate_axis(w, H, H_pad):
    """(4H, ...) -> (4*H_pad, ...) with each of the [i,f,g,o] gate blocks zero-padded."""
    shp = w.shape
    w4 = w.reshape(4, H, *shp[1:])
    pads = [(0, 0), (0, H_pad - H)] + [(0, 0)] * (len(shp) - 1)
    return jnp.pad(w4, pads).reshape(4 * H_pad, *shp[1:])


def _vmem_usage_bytes(rows_blk, E_pad, H_pad, v_blk, B_pad):
    """Approximate VMEM footprint: pipelined blocks (x2 buffers) + scratch."""
    return (
        2 * rows_blk * E_pad * 2          # emb block, bf16, double-buffered
        + 2 * H_pad * v_blk * 2           # FC weight tile, bf16, double-buffered
        + 2 * 8 * v_blk * 4               # FC bias tile (sublane-padded)
        + 2 * 8 * 4 * H_pad * 4           # gate bias block
        + 2 * rows_blk * v_blk * 4        # out tile, f32, double-buffered
        + E_pad * 4 * H_pad * 2           # resident w_ih
        + H_pad * 4 * H_pad * 2           # resident w_hh
        + rows_blk * 4 * H_pad * 4        # xproj scratch, f32
        + rows_blk * H_pad * 2            # hs slab, bf16
        + B_pad * H_pad * (2 + 4)         # h (bf16) + c (f32) carries
    )


def type_predictor_forward(x, params, *, t_blk=None, v_blk=None,
                           vmem_budget_bytes=48 * 1024 * 1024):
    """x: (B, T) int32 token ids.  Returns logits (B, T, vocab) float32."""
    emb_table = params["embedding"]                   # (V, E)
    w_ih, w_hh = params["w_ih"], params["w_hh"]       # (4H, E), (4H, H)
    b_ih, b_hh = params["b_ih"], params["b_hh"]       # (4H,), (4H,)
    w_fc, b_fc = params["w_fc"], params["b_fc"]       # (V, H), (V,)

    B, T = x.shape
    V, E = emb_table.shape
    H = w_hh.shape[1]

    E_pad = _round_up(E, _LANE)
    H_pad = _round_up(H, _LANE)
    V_pad0 = _round_up(V, _LANE)
    B_pad = _round_up(B, _SUBLANE)

    # --- tile sizing: fill the MXU M dimension, stay inside the VMEM budget ---
    if t_blk is None:
        t_blk = max(1, min(_MXU_ROWS // B_pad, T))
    if v_blk is None:
        v_blk = min(V_pad0, 2048)
    while (_vmem_usage_bytes(t_blk * B_pad, E_pad, H_pad, v_blk, B_pad)
           > vmem_budget_bytes) and (v_blk > _LANE or t_blk > 1):
        if v_blk > _LANE:
            v_blk = max(_LANE, (v_blk // 2) // _LANE * _LANE)
        else:
            t_blk = max(1, t_blk // 2)

    T_pad = _round_up(T, t_blk)
    V_pad = _round_up(V_pad0, v_blk)
    n_t = T_pad // t_blk
    n_v = V_pad // v_blk
    rows_blk = t_blk * B_pad

    # --- glue: embedding gather, time-major flat layout, zero padding ---
    embed = jnp.take(emb_table, x, axis=0)                       # (B, T, E)
    embed_tm = jnp.transpose(embed, (1, 0, 2))                   # (T, B, E)
    embed_tm = jnp.pad(embed_tm, ((0, T_pad - T), (0, B_pad - B), (0, E_pad - E)))
    embed_flat = embed_tm.reshape(T_pad * B_pad, E_pad).astype(jnp.bfloat16)

    # --- glue: per-gate-padded, transposed, bf16 weights ---
    w_ih_p = _pad_gate_axis(w_ih, H, H_pad)                      # (4H_pad, E)
    w_ih_t = jnp.pad(w_ih_p, ((0, 0), (0, E_pad - E))).T.astype(jnp.bfloat16)
    w_hh_p = _pad_gate_axis(w_hh, H, H_pad)                      # (4H_pad, H)
    w_hh_t = jnp.pad(w_hh_p, ((0, 0), (0, H_pad - H))).T.astype(jnp.bfloat16)
    b_gates = jnp.pad((b_ih + b_hh).reshape(4, H),
                      ((0, 0), (0, H_pad - H))).reshape(1, 4 * H_pad)
    w_fc_t = jnp.pad(w_fc, ((0, V_pad - V), (0, H_pad - H))).T.astype(jnp.bfloat16)
    b_fc_p = jnp.pad(b_fc, (0, V_pad - V)).reshape(1, V_pad)

    kernel = functools.partial(_lstm_fc_kernel, t_blk=t_blk, b_pad=B_pad,
                               unroll=min(t_blk, 8))

    usage = _vmem_usage_bytes(rows_blk, E_pad, H_pad, v_blk, B_pad)
    vmem_limit = min(max(int(usage * 1.3) + (4 << 20), 32 << 20), 100 << 20)

    out_flat = pl.pallas_call(
        kernel,
        out_shape=jax.ShapeDtypeStruct((T_pad * B_pad, V_pad), jnp.float32),
        grid_spec=pltpu.PrefetchScalarGridSpec(
            num_scalar_prefetch=0,
            grid=(n_t, n_v),
            in_specs=[
                pl.BlockSpec((rows_blk, E_pad), lambda i, j: (i, 0)),   # embed block
                pl.BlockSpec(memory_space=pl.ANY),                      # w_ih_t (HBM)
                pl.BlockSpec(memory_space=pl.ANY),                      # w_hh_t (HBM)
                pl.BlockSpec((1, 4 * H_pad), lambda i, j: (0, 0)),      # gate bias
                pl.BlockSpec((H_pad, v_blk), lambda i, j: (0, j)),      # FC weight tile
                pl.BlockSpec((1, v_blk), lambda i, j: (0, j)),          # FC bias tile
            ],
            out_specs=pl.BlockSpec((rows_blk, v_blk), lambda i, j: (i, j)),
            scratch_shapes=[
                pltpu.VMEM((E_pad, 4 * H_pad), jnp.bfloat16),           # w_ih resident
                pltpu.VMEM((H_pad, 4 * H_pad), jnp.bfloat16),           # w_hh resident
                pltpu.VMEM((rows_blk, 4 * H_pad), jnp.float32),         # xproj
                pltpu.VMEM((rows_blk, H_pad), jnp.bfloat16),            # hs slab (bf16)
                pltpu.VMEM((B_pad, H_pad), jnp.bfloat16),               # h carry (bf16)
                pltpu.VMEM((B_pad, H_pad), jnp.float32),                # c carry (f32)
            ],
        ),
        compiler_params=pltpu.CompilerParams(
            dimension_semantics=("arbitrary", "arbitrary"),  # T recurrence, V reuses hs
            vmem_limit_bytes=vmem_limit,
        ),
    )(embed_flat, w_ih_t, w_hh_t, b_gates, w_fc_t, b_fc_p)

    out = out_flat.reshape(T_pad, B_pad, V_pad)[:T, :B, :V]     # drop padding
    return jnp.transpose(out, (1, 0, 2))                        # (B, T, V)


def init_params(key, vocab_size, embed_size, hidden_size):
    ks = jax.random.split(key, 7)
    s = 0.1
    return {
        "embedding": jax.random.normal(ks[0], (vocab_size, embed_size), jnp.float32),
        "w_ih": s * jax.random.normal(ks[1], (4 * hidden_size, embed_size), jnp.float32),
        "w_hh": s * jax.random.normal(ks[2], (4 * hidden_size, hidden_size), jnp.float32),
        "b_ih": s * jax.random.normal(ks[3], (4 * hidden_size,), jnp.float32),
        "b_hh": s * jax.random.normal(ks[4], (4 * hidden_size,), jnp.float32),
        "w_fc": s * jax.random.normal(ks[5], (vocab_size, hidden_size), jnp.float32),
        "b_fc": s * jax.random.normal(ks[6], (vocab_size,), jnp.float32),
    }


def _reference_forward(x, params):
    """Pure-JAX reference matching torch semantics (sanity check)."""
    emb = jnp.take(params["embedding"], x, axis=0)     # (B, T, E)
    H = params["w_hh"].shape[1]
    w_ih_t, w_hh_t = params["w_ih"].T, params["w_hh"].T
    b = params["b_ih"] + params["b_hh"]

    def cell(carry, x_t):
        h, c = carry
        g = x_t @ w_ih_t + h @ w_hh_t + b
        i = jax.nn.sigmoid(g[:, 0:H])
        f = jax.nn.sigmoid(g[:, H:2 * H])
        gg = jnp.tanh(g[:, 2 * H:3 * H])
        o = jax.nn.sigmoid(g[:, 3 * H:4 * H])
        c = f * c + i * gg
        h = o * jnp.tanh(c)
        return (h, c), h

    B = x.shape[0]
    init = (jnp.zeros((B, H), jnp.float32), jnp.zeros((B, H), jnp.float32))
    _, hs = jax.lax.scan(cell, init, jnp.transpose(emb, (1, 0, 2)))   # (T, B, H)
    out = jnp.transpose(hs, (1, 0, 2))                                # (B, T, H)
    return out @ params["w_fc"].T + params["b_fc"]


if __name__ == "__main__":
    vocab_size, embed_size, hidden_size = 32, 16, 32
    batch, seq = 2, 8

    key = jax.random.PRNGKey(0)
    k_params, k_x = jax.random.split(key)
    params = init_params(k_params, vocab_size, embed_size, hidden_size)
    x = jax.random.randint(k_x, (batch, seq), 0, vocab_size, dtype=jnp.int32)

    logits = jax.jit(type_predictor_forward)(x, params)
    jax.block_until_ready(logits)

    assert logits.shape == (batch, seq, vocab_size)
    ref = _reference_forward(x, params)
    assert jnp.allclose(logits, ref, rtol=2e-2, atol=2e-2), "mismatch vs reference"

    print("KERNEL_OK")
</pallas_src>

<mosaic_0001>
module attributes {stable_mosaic.version = 11 : i64} {
  func.func @_lstm_fc_kernel(%arg0: i32, %arg1: i32, %arg2: memref<64x128xbf16, #tpu.memory_space<vmem>>, %arg3: memref<128x512xbf16, #tpu.memory_space<any>>, %arg4: memref<128x512xbf16, #tpu.memory_space<any>>, %arg5: memref<1x512xf32, #tpu.memory_space<vmem>>, %arg6: memref<128x128xbf16, #tpu.memory_space<vmem>>, %arg7: memref<1x128xf32, #tpu.memory_space<vmem>>, %arg8: memref<64x128xf32, #tpu.memory_space<vmem>>, %arg9: memref<128x512xbf16, #tpu.memory_space<vmem>>, %arg10: memref<128x512xbf16, #tpu.memory_space<vmem>>, %arg11: memref<64x512xf32, #tpu.memory_space<vmem>>, %arg12: memref<64x128xbf16, #tpu.memory_space<vmem>>, %arg13: memref<8x128xbf16, #tpu.memory_space<vmem>>, %arg14: memref<8x128xf32, #tpu.memory_space<vmem>>) attributes {dimension_semantics = [#tpu.dimension_semantics<arbitrary>, #tpu.dimension_semantics<arbitrary>], iteration_bounds = array<i64: 1, 1>, scalar_prefetch = 0 : i64, scratch_operands = 6 : i64, tpu.core_type = #tpu.core_type<tc>, window_params = [{transform_indices = @transform_0, window_bounds = array<i64: 64, 128>}, {}, {}, {pipeline_mode = #tpu.pipeline_mode<synchronous>, transform_indices = @transform_3, window_bounds = array<i64: 1, 512>}, {transform_indices = @transform_4, window_bounds = array<i64: 128, 128>}, {transform_indices = @transform_5, window_bounds = array<i64: 1, 128>}, {transform_indices = @transform_6, window_bounds = array<i64: 64, 128>}]} {
    %c0_i32 = arith.constant 0 : i32
    %0 = arith.cmpi eq, %arg0, %c0_i32 : i32
    %c0_i32_0 = arith.constant 0 : i32
    %1 = arith.cmpi eq, %arg1, %c0_i32_0 : i32
    %2 = arith.andi %0, %1 : i1
    %3 = arith.extui %2 : i1 to i32
    %c0_i32_1 = arith.constant 0 : i32
    %4 = arith.cmpi ne, %3, %c0_i32_1 : i32
    scf.if %4 {
      "tpu.region"() ({
        %19 = tpu.sem_alloc : memref<!tpu.dma_semaphore, #tpu.memory_space<semaphore_mem>>
        tpu.enqueue_dma source(%arg3 : memref<128x512xbf16, #tpu.memory_space<any>>) target(%arg9 : memref<128x512xbf16, #tpu.memory_space<vmem>>) target_semaphore(%19 : memref<!tpu.dma_semaphore, #tpu.memory_space<semaphore_mem>>)
        tpu.wait_dma2 semaphore(%19 : memref<!tpu.dma_semaphore, #tpu.memory_space<semaphore_mem>>) src(%arg3 : memref<128x512xbf16, #tpu.memory_space<any>>) dst(%arg9 : memref<128x512xbf16, #tpu.memory_space<vmem>>)
        tpu.yield
      }) : () -> ()
      "tpu.region"() ({
        %19 = tpu.sem_alloc : memref<!tpu.dma_semaphore, #tpu.memory_space<semaphore_mem>>
        tpu.enqueue_dma source(%arg4 : memref<128x512xbf16, #tpu.memory_space<any>>) target(%arg10 : memref<128x512xbf16, #tpu.memory_space<vmem>>) target_semaphore(%19 : memref<!tpu.dma_semaphore, #tpu.memory_space<semaphore_mem>>)
        tpu.wait_dma2 semaphore(%19 : memref<!tpu.dma_semaphore, #tpu.memory_space<semaphore_mem>>) src(%arg4 : memref<128x512xbf16, #tpu.memory_space<any>>) dst(%arg10 : memref<128x512xbf16, #tpu.memory_space<vmem>>)
        tpu.yield
      }) : () -> ()
      %cst_11 = arith.constant 0.000000e+00 : bf16
      %15 = vector.broadcast %cst_11 : bf16 to vector<8x128xbf16>
      %c0_12 = arith.constant 0 : index
      %c0_13 = arith.constant 0 : index
      %16 = vector.load %arg13[%c0_12, %c0_13] : memref<8x128xbf16, #tpu.memory_space<vmem>>, vector<8x128xbf16>
      tpu.vector_store %arg13[%c0_12, %c0_13], %15 {strides = array<i32>} : memref<8x128xbf16, #tpu.memory_space<vmem>>, vector<8x128xbf16>,
      %cst_14 = arith.constant 0.000000e+00 : f32
      %17 = vector.broadcast %cst_14 : f32 to vector<8x128xf32>
      %c0_15 = arith.constant 0 : index
      %c0_16 = arith.constant 0 : index
      %18 = vector.load %arg14[%c0_15, %c0_16] : memref<8x128xf32, #tpu.memory_space<vmem>>, vector<8x128xf32>
      tpu.vector_store %arg14[%c0_15, %c0_16], %17 {strides = array<i32>} : memref<8x128xf32, #tpu.memory_space<vmem>>, vector<8x128xf32>,
    } else {
    }
    %c0_i32_2 = arith.constant 0 : i32
    %5 = arith.cmpi eq, %arg1, %c0_i32_2 : i32
    %6 = arith.extui %5 : i1 to i32
    %c0_i32_3 = arith.constant 0 : i32
    %7 = arith.cmpi ne, %6, %c0_i32_3 : i32
    scf.if %7 {
      %c0_11 = arith.constant 0 : index
      %c0_12 = arith.constant 0 : index
      %15 = vector.load %arg2[%c0_11, %c0_12] : memref<64x128xbf16, #tpu.memory_space<vmem>>, vector<64x128xbf16>
      %c0_13 = arith.constant 0 : index
      %c0_14 = arith.constant 0 : index
      %16 = vector.load %arg9[%c0_13, %c0_14] : memref<128x512xbf16, #tpu.memory_space<vmem>>, vector<128x512xbf16>
      %cst_15 = arith.constant dense<0.000000e+00> : vector<64x512xf32>
      %17 = tpu.matmul %15, %16, %cst_15 {dimension_numbers = #tpu.dot_dimension_numbers<[1], [0], [0], [1], [0, 0, 1, 1], [], []>} : vector<64x128xbf16>, vector<128x512xbf16>, vector<64x512xf32> -> vector<64x512xf32>
      %c0_16 = arith.constant 0 : index
      %c0_17 = arith.constant 0 : index
      %18 = vector.load %arg5[%c0_16, %c0_17] : memref<1x512xf32, #tpu.memory_space<vmem>>, vector<1x512xf32>
      %19 = vector.broadcast %18 : vector<1x512xf32> to vector<64x512xf32>
      %20 = arith.addf %17, %19 : vector<64x512xf32>
      %c0_18 = arith.constant 0 : index
      %c0_19 = arith.constant 0 : index
      %21 = vector.load %arg11[%c0_18, %c0_19] : memref<64x512xf32, #tpu.memory_space<vmem>>, vector<64x512xf32>
      tpu.vector_store %arg11[%c0_18, %c0_19], %20 {strides = array<i32>} : memref<64x512xf32, #tpu.memory_space<vmem>>, vector<64x512xf32>,
      %c0_20 = arith.constant 0 : index
      %c0_21 = arith.constant 0 : index
      %22 = vector.load %arg10[%c0_20, %c0_21] : memref<128x512xbf16, #tpu.memory_space<vmem>>, vector<128x512xbf16>
      %c0_22 = arith.constant 0 : index
      %c0_23 = arith.constant 0 : index
      %23 = vector.load %arg13[%c0_22, %c0_23] : memref<8x128xbf16, #tpu.memory_space<vmem>>, vector<8x128xbf16>
      %c0_24 = arith.constant 0 : index
      %c0_25 = arith.constant 0 : index
      %24 = vector.load %arg14[%c0_24, %c0_25] : memref<8x128xf32, #tpu.memory_space<vmem>>, vector<8x128xf32>
      %c0_i32_26 = arith.constant 0 : i32
      %c8_i32 = arith.constant 8 : i32
      %25 = arith.muli %c0_i32_26, %c8_i32 : i32
      %26 = tpu.assume_multiple %25, 8 : i32
      %27 = arith.index_cast %26 : i32 to index
      %c0_27 = arith.constant 0 : index
      %28 = vector.load %arg11[%27, %c0_27] : memref<64x512xf32, #tpu.memory_space<vmem>>, vector<8x512xf32>
      %cst_28 = arith.constant dense<0.000000e+00> : vector<8x512xf32>
      %29 = tpu.matmul %23, %22, %cst_28 {dimension_numbers = #tpu.dot_dimension_numbers<[1], [0], [0], [1], [0, 0, 1, 1], [], []>} : vector<8x128xbf16>, vector<128x512xbf16>, vector<8x512xf32> -> vector<8x512xf32>
      %30 = arith.addf %28, %29 : vector<8x512xf32>
      %31 = vector.extract_strided_slice %30 {offsets = [0, 0], sizes = [8, 256], strides = [1, 1]} : vector<8x512xf32> to vector<8x256xf32>
      %32 = arith.negf %31 : vector<8x256xf32>
      %33 = math.exp %32 : vector<8x256xf32>
      %cst_29 = arith.constant 1.000000e+00 : f32
      %34 = vector.broadcast %cst_29 : f32 to vector<8x256xf32>
      %35 = arith.addf %34, %33 : vector<8x256xf32>
      %36 = arith.divf %34, %35 : vector<8x256xf32>
      %37 = vector.extract_strided_slice %30 {offsets = [0, 384], sizes = [8, 128], strides = [1, 1]} : vector<8x512xf32> to vector<8x128xf32>
      %38 = arith.negf %37 : vector<8x128xf32>
      %39 = math.exp %38 : vector<8x128xf32>
      %cst_30 = arith.constant 1.000000e+00 : f32
      %40 = vector.broadcast %cst_30 : f32 to vector<8x128xf32>
      %41 = arith.addf %40, %39 : vector<8x128xf32>
      %42 = arith.divf %40, %41 : vector<8x128xf32>
      %43 = vector.extract_strided_slice %30 {offsets = [0, 256], sizes = [8, 128], strides = [1, 1]} : vector<8x512xf32> to vector<8x128xf32>
      %44 = math.tanh %43 : vector<8x128xf32>
      %45 = vector.extract_strided_slice %36 {offsets = [0, 128], sizes = [8, 128], strides = [1, 1]} : vector<8x256xf32> to vector<8x128xf32>
      %46 = arith.mulf %45, %24 : vector<8x128xf32>
      %47 = vector.extract_strided_slice %36 {offsets = [0, 0], sizes = [8, 128], strides = [1, 1]} : vector<8x256xf32> to vector<8x128xf32>
      %48 = arith.mulf %47, %44 : vector<8x128xf32>
      %49 = arith.addf %46, %48 : vector<8x128xf32>
      %50 = math.tanh %49 : vector<8x128xf32>
      %51 = arith.mulf %42, %50 : vector<8x128xf32>
      %52 = arith.truncf %51 : vector<8x128xf32> to vector<8x128xbf16>
      %53 = arith.index_cast %26 : i32 to index
      %c0_31 = arith.constant 0 : index
      %54 = vector.load %arg12[%53, %c0_31] : memref<64x128xbf16, #tpu.memory_space<vmem>>, vector<8x128xbf16>
      tpu.vector_store %arg12[%53, %c0_31], %52 {strides = array<i32>} : memref<64x128xbf16, #tpu.memory_space<vmem>>, vector<8x128xbf16>,
      %c1_i32 = arith.constant 1 : i32
      %c8_i32_32 = arith.constant 8 : i32
      %55 = arith.muli %c1_i32, %c8_i32_32 : i32
      %56 = tpu.assume_multiple %55, 8 : i32
      %57 = arith.index_cast %56 : i32 to index
      %c0_33 = arith.constant 0 : index
      %58 = vector.load %arg11[%57, %c0_33] : memref<64x512xf32, #tpu.memory_space<vmem>>, vector<8x512xf32>
      %cst_34 = arith.constant dense<0.000000e+00> : vector<8x512xf32>
      %59 = tpu.matmul %52, %22, %cst_34 {dimension_numbers = #tpu.dot_dimension_numbers<[1], [0], [0], [1], [0, 0, 1, 1], [], []>} : vector<8x128xbf16>, vector<128x512xbf16>, vector<8x512xf32> -> vector<8x512xf32>
      %60 = arith.addf %58, %59 : vector<8x512xf32>
      %61 = vector.extract_strided_slice %60 {offsets = [0, 0], sizes = [8, 256], strides = [1, 1]} : vector<8x512xf32> to vector<8x256xf32>
      %62 = arith.negf %61 : vector<8x256xf32>
      %63 = math.exp %62 : vector<8x256xf32>
      %cst_35 = arith.constant 1.000000e+00 : f32
      %64 = vector.broadcast %cst_35 : f32 to vector<8x256xf32>
      %65 = arith.addf %64, %63 : vector<8x256xf32>
      %66 = arith.divf %64, %65 : vector<8x256xf32>
      %67 = vector.extract_strided_slice %60 {offsets = [0, 384], sizes = [8, 128], strides = [1, 1]} : vector<8x512xf32> to vector<8x128xf32>
      %68 = arith.negf %67 : vector<8x128xf32>
      %69 = math.exp %68 : vector<8x128xf32>
      %cst_36 = arith.constant 1.000000e+00 : f32
      %70 = vector.broadcast %cst_36 : f32 to vector<8x128xf32>
      %71 = arith.addf %70, %69 : vector<8x128xf32>
      %72 = arith.divf %70, %71 : vector<8x128xf32>
      %73 = vector.extract_strided_slice %60 {offsets = [0, 256], sizes = [8, 128], strides = [1, 1]} : vector<8x512xf32> to vector<8x128xf32>
      %74 = math.tanh %73 : vector<8x128xf32>
      %75 = vector.extract_strided_slice %66 {offsets = [0, 128], sizes = [8, 128], strides = [1, 1]} : vector<8x256xf32> to vector<8x128xf32>
      %76 = arith.mulf %75, %49 : vector<8x128xf32>
      %77 = vector.extract_strided_slice %66 {offsets = [0, 0], sizes = [8, 128], strides = [1, 1]} : vector<8x256xf32> to vector<8x128xf32>
      %78 = arith.mulf %77, %74 : vector<8x128xf32>
      %79 = arith.addf %76, %78 : vector<8x128xf32>
      %80 = math.tanh %79 : vector<8x128xf32>
      %81 = arith.mulf %72, %80 : vector<8x128xf32>
      %82 = arith.truncf %81 : vector<8x128xf32> to vector<8x128xbf16>
      %83 = arith.index_cast %56 : i32 to index
      %c0_37 = arith.constant 0 : index
      %84 = vector.load %arg12[%83, %c0_37] : memref<64x128xbf16, #tpu.memory_space<vmem>>, vector<8x128xbf16>
      tpu.vector_store %arg12[%83, %c0_37], %82 {strides = array<i32>} : memref<64x128xbf16, #tpu.memory_space<vmem>>, vector<8x128xbf16>,
      %c2_i32 = arith.constant 2 : i32
      %c8_i32_38 = arith.constant 8 : i32
      %85 = arith.muli %c2_i32, %c8_i32_38 : i32
      %86 = tpu.assume_multiple %85, 8 : i32
      %87 = arith.index_cast %86 : i32 to index
      %c0_39 = arith.constant 0 : index
      %88 = vector.load %arg11[%87, %c0_39] : memref<64x512xf32, #tpu.memory_space<vmem>>, vector<8x512xf32>
      %cst_40 = arith.constant dense<0.000000e+00> : vector<8x512xf32>
      %89 = tpu.matmul %82, %22, %cst_40 {dimension_numbers = #tpu.dot_dimension_numbers<[1], [0], [0], [1], [0, 0, 1, 1], [], []>} : vector<8x128xbf16>, vector<128x512xbf16>, vector<8x512xf32> -> vector<8x512xf32>
      %90 = arith.addf %88, %89 : vector<8x512xf32>
      %91 = vector.extract_strided_slice %90 {offsets = [0, 0], sizes = [8, 256], strides = [1, 1]} : vector<8x512xf32> to vector<8x256xf32>
      %92 = arith.negf %91 : vector<8x256xf32>
      %93 = math.exp %92 : vector<8x256xf32>
      %cst_41 = arith.constant 1.000000e+00 : f32
      %94 = vector.broadcast %cst_41 : f32 to vector<8x256xf32>
      %95 = arith.addf %94, %93 : vector<8x256xf32>
      %96 = arith.divf %94, %95 : vector<8x256xf32>
      %97 = vector.extract_strided_slice %90 {offsets = [0, 384], sizes = [8, 128], strides = [1, 1]} : vector<8x512xf32> to vector<8x128xf32>
      %98 = arith.negf %97 : vector<8x128xf32>
      %99 = math.exp %98 : vector<8x128xf32>
      %cst_42 = arith.constant 1.000000e+00 : f32
      %100 = vector.broadcast %cst_42 : f32 to vector<8x128xf32>
      %101 = arith.addf %100, %99 : vector<8x128xf32>
      %102 = arith.divf %100, %101 : vector<8x128xf32>
      %103 = vector.extract_strided_slice %90 {offsets = [0, 256], sizes = [8, 128], strides = [1, 1]} : vector<8x512xf32> to vector<8x128xf32>
      %104 = math.tanh %103 : vector<8x128xf32>
      %105 = vector.extract_strided_slice %96 {offsets = [0, 128], sizes = [8, 128], strides = [1, 1]} : vector<8x256xf32> to vector<8x128xf32>
      %106 = arith.mulf %105, %79 : vector<8x128xf32>
      %107 = vector.extract_strided_slice %96 {offsets = [0, 0], sizes = [8, 128], strides = [1, 1]} : vector<8x256xf32> to vector<8x128xf32>
      %108 = arith.mulf %107, %104 : vector<8x128xf32>
      %109 = arith.addf %106, %108 : vector<8x128xf32>
      %110 = math.tanh %109 : vector<8x128xf32>
      %111 = arith.mulf %102, %110 : vector<8x128xf32>
      %112 = arith.truncf %111 : vector<8x128xf32> to vector<8x128xbf16>
      %113 = arith.index_cast %86 : i32 to index
      %c0_43 = arith.constant 0 : index
      %114 = vector.load %arg12[%113, %c0_43] : memref<64x128xbf16, #tpu.memory_space<vmem>>, vector<8x128xbf16>
      tpu.vector_store %arg12[%113, %c0_43], %112 {strides = array<i32>} : memref<64x128xbf16, #tpu.memory_space<vmem>>, vector<8x128xbf16>,
      %c3_i32 = arith.constant 3 : i32
      %c8_i32_44 = arith.constant 8 : i32
      %115 = arith.muli %c3_i32, %c8_i32_44 : i32
      %116 = tpu.assume_multiple %115, 8 : i32
      %117 = arith.index_cast %116 : i32 to index
      %c0_45 = arith.constant 0 : index
      %118 = vector.load %arg11[%117, %c0_45] : memref<64x512xf32, #tpu.memory_space<vmem>>, vector<8x512xf32>
      %cst_46 = arith.constant dense<0.000000e+00> : vector<8x512xf32>
      %119 = tpu.matmul %112, %22, %cst_46 {dimension_numbers = #tpu.dot_dimension_numbers<[1], [0], [0], [1], [0, 0, 1, 1], [], []>} : vector<8x128xbf16>, vector<128x512xbf16>, vector<8x512xf32> -> vector<8x512xf32>
      %120 = arith.addf %118, %119 : vector<8x512xf32>
      %121 = vector.extract_strided_slice %120 {offsets = [0, 0], sizes = [8, 256], strides = [1, 1]} : vector<8x512xf32> to vector<8x256xf32>
      %122 = arith.negf %121 : vector<8x256xf32>
      %123 = math.exp %122 : vector<8x256xf32>
      %cst_47 = arith.constant 1.000000e+00 : f32
      %124 = vector.broadcast %cst_47 : f32 to vector<8x256xf32>
      %125 = arith.addf %124, %123 : vector<8x256xf32>
      %126 = arith.divf %124, %125 : vector<8x256xf32>
      %127 = vector.extract_strided_slice %120 {offsets = [0, 384], sizes = [8, 128], strides = [1, 1]} : vector<8x512xf32> to vector<8x128xf32>
      %128 = arith.negf %127 : vector<8x128xf32>
      %129 = math.exp %128 : vector<8x128xf32>
      %cst_48 = arith.constant 1.000000e+00 : f32
      %130 = vector.broadcast %cst_48 : f32 to vector<8x128xf32>
      %131 = arith.addf %130, %129 : vector<8x128xf32>
      %132 = arith.divf %130, %131 : vector<8x128xf32>
      %133 = vector.extract_strided_slice %120 {offsets = [0, 256], sizes = [8, 128], strides = [1, 1]} : vector<8x512xf32> to vector<8x128xf32>
      %134 = math.tanh %133 : vector<8x128xf32>
      %135 = vector.extract_strided_slice %126 {offsets = [0, 128], sizes = [8, 128], strides = [1, 1]} : vector<8x256xf32> to vector<8x128xf32>
      %136 = arith.mulf %135, %109 : vector<8x128xf32>
      %137 = vector.extract_strided_slice %126 {offsets = [0, 0], sizes = [8, 128], strides = [1, 1]} : vector<8x256xf32> to vector<8x128xf32>
      %138 = arith.mulf %137, %134 : vector<8x128xf32>
      %139 = arith.addf %136, %138 : vector<8x128xf32>
      %140 = math.tanh %139 : vector<8x128xf32>
      %141 = arith.mulf %132, %140 : vector<8x128xf32>
      %142 = arith.truncf %141 : vector<8x128xf32> to vector<8x128xbf16>
      %143 = arith.index_cast %116 : i32 to index
      %c0_49 = arith.constant 0 : index
      %144 = vector.load %arg12[%143, %c0_49] : memref<64x128xbf16, #tpu.memory_space<vmem>>, vector<8x128xbf16>
      tpu.vector_store %arg12[%143, %c0_49], %142 {strides = array<i32>} : memref<64x128xbf16, #tpu.memory_space<vmem>>, vector<8x128xbf16>,
      %c4_i32 = arith.constant 4 : i32
      %c8_i32_50 = arith.constant 8 : i32
      %145 = arith.muli %c4_i32, %c8_i32_50 : i32
      %146 = tpu.assume_multiple %145, 8 : i32
      %147 = arith.index_cast %146 : i32 to index
      %c0_51 = arith.constant 0 : index
      %148 = vector.load %arg11[%147, %c0_51] : memref<64x512xf32, #tpu.memory_space<vmem>>, vector<8x512xf32>
      %cst_52 = arith.constant dense<0.000000e+00> : vector<8x512xf32>
      %149 = tpu.matmul %142, %22, %cst_52 {dimension_numbers = #tpu.dot_dimension_numbers<[1], [0], [0], [1], [0, 0, 1, 1], [], []>} : vector<8x128xbf16>, vector<128x512xbf16>, vector<8x512xf32> -> vector<8x512xf32>
      %150 = arith.addf %148, %149 : vector<8x512xf32>
      %151 = vector.extract_strided_slice %150 {offsets = [0, 0], sizes = [8, 256], strides = [1, 1]} : vector<8x512xf32> to vector<8x256xf32>
      %152 = arith.negf %151 : vector<8x256xf32>
      %153 = math.exp %152 : vector<8x256xf32>
      %cst_53 = arith.constant 1.000000e+00 : f32
      %154 = vector.broadcast %cst_53 : f32 to vector<8x256xf32>
      %155 = arith.addf %154, %153 : vector<8x256xf32>
      %156 = arith.divf %154, %155 : vector<8x256xf32>
      %157 = vector.extract_strided_slice %150 {offsets = [0, 384], sizes = [8, 128], strides = [1, 1]} : vector<8x512xf32> to vector<8x128xf32>
      %158 = arith.negf %157 : vector<8x128xf32>
      %159 = math.exp %158 : vector<8x128xf32>
      %cst_54 = arith.constant 1.000000e+00 : f32
      %160 = vector.broadcast %cst_54 : f32 to vector<8x128xf32>
      %161 = arith.addf %160, %159 : vector<8x128xf32>
      %162 = arith.divf %160, %161 : vector<8x128xf32>
      %163 = vector.extract_strided_slice %150 {offsets = [0, 256], sizes = [8, 128], strides = [1, 1]} : vector<8x512xf32> to vector<8x128xf32>
      %164 = math.tanh %163 : vector<8x128xf32>
      %165 = vector.extract_strided_slice %156 {offsets = [0, 128], sizes = [8, 128], strides = [1, 1]} : vector<8x256xf32> to vector<8x128xf32>
      %166 = arith.mulf %165, %139 : vector<8x128xf32>
      %167 = vector.extract_strided_slice %156 {offsets = [0, 0], sizes = [8, 128], strides = [1, 1]} : vector<8x256xf32> to vector<8x128xf32>
      %168 = arith.mulf %167, %164 : vector<8x128xf32>
      %169 = arith.addf %166, %168 : vector<8x128xf32>
      %170 = math.tanh %169 : vector<8x128xf32>
      %171 = arith.mulf %162, %170 : vector<8x128xf32>
      %172 = arith.truncf %171 : vector<8x128xf32> to vector<8x128xbf16>
      %173 = arith.index_cast %146 : i32 to index
      %c0_55 = arith.constant 0 : index
      %174 = vector.load %arg12[%173, %c0_55] : memref<64x128xbf16, #tpu.memory_space<vmem>>, vector<8x128xbf16>
      tpu.vector_store %arg12[%173, %c0_55], %172 {strides = array<i32>} : memref<64x128xbf16, #tpu.memory_space<vmem>>, vector<8x128xbf16>,
      %c5_i32 = arith.constant 5 : i32
      %c8_i32_56 = arith.constant 8 : i32
      %175 = arith.muli %c5_i32, %c8_i32_56 : i32
      %176 = tpu.assume_multiple %175, 8 : i32
      %177 = arith.index_cast %176 : i32 to index
      %c0_57 = arith.constant 0 : index
      %178 = vector.load %arg11[%177, %c0_57] : memref<64x512xf32, #tpu.memory_space<vmem>>, vector<8x512xf32>
      %cst_58 = arith.constant dense<0.000000e+00> : vector<8x512xf32>
      %179 = tpu.matmul %172, %22, %cst_58 {dimension_numbers = #tpu.dot_dimension_numbers<[1], [0], [0], [1], [0, 0, 1, 1], [], []>} : vector<8x128xbf16>, vector<128x512xbf16>, vector<8x512xf32> -> vector<8x512xf32>
      %180 = arith.addf %178, %179 : vector<8x512xf32>
      %181 = vector.extract_strided_slice %180 {offsets = [0, 0], sizes = [8, 256], strides = [1, 1]} : vector<8x512xf32> to vector<8x256xf32>
      %182 = arith.negf %181 : vector<8x256xf32>
      %183 = math.exp %182 : vector<8x256xf32>
      %cst_59 = arith.constant 1.000000e+00 : f32
      %184 = vector.broadcast %cst_59 : f32 to vector<8x256xf32>
      %185 = arith.addf %184, %183 : vector<8x256xf32>
      %186 = arith.divf %184, %185 : vector<8x256xf32>
      %187 = vector.extract_strided_slice %180 {offsets = [0, 384], sizes = [8, 128], strides = [1, 1]} : vector<8x512xf32> to vector<8x128xf32>
      %188 = arith.negf %187 : vector<8x128xf32>
      %189 = math.exp %188 : vector<8x128xf32>
      %cst_60 = arith.constant 1.000000e+00 : f32
      %190 = vector.broadcast %cst_60 : f32 to vector<8x128xf32>
      %191 = arith.addf %190, %189 : vector<8x128xf32>
      %192 = arith.divf %190, %191 : vector<8x128xf32>
      %193 = vector.extract_strided_slice %180 {offsets = [0, 256], sizes = [8, 128], strides = [1, 1]} : vector<8x512xf32> to vector<8x128xf32>
      %194 = math.tanh %193 : vector<8x128xf32>
      %195 = vector.extract_strided_slice %186 {offsets = [0, 128], sizes = [8, 128], strides = [1, 1]} : vector<8x256xf32> to vector<8x128xf32>
      %196 = arith.mulf %195, %169 : vector<8x128xf32>
      %197 = vector.extract_strided_slice %186 {offsets = [0, 0], sizes = [8, 128], strides = [1, 1]} : vector<8x256xf32> to vector<8x128xf32>
      %198 = arith.mulf %197, %194 : vector<8x128xf32>
      %199 = arith.addf %196, %198 : vector<8x128xf32>
      %200 = math.tanh %199 : vector<8x128xf32>
      %201 = arith.mulf %192, %200 : vector<8x128xf32>
      %202 = arith.truncf %201 : vector<8x128xf32> to vector<8x128xbf16>
      %203 = arith.index_cast %176 : i32 to index
      %c0_61 = arith.constant 0 : index
      %204 = vector.load %arg12[%203, %c0_61] : memref<64x128xbf16, #tpu.memory_space<vmem>>, vector<8x128xbf16>
      tpu.vector_store %arg12[%203, %c0_61], %202 {strides = array<i32>} : memref<64x128xbf16, #tpu.memory_space<vmem>>, vector<8x128xbf16>,
      %c6_i32 = arith.constant 6 : i32
      %c8_i32_62 = arith.constant 8 : i32
      %205 = arith.muli %c6_i32, %c8_i32_62 : i32
      %206 = tpu.assume_multiple %205, 8 : i32
      %207 = arith.index_cast %206 : i32 to index
      %c0_63 = arith.constant 0 : index
      %208 = vector.load %arg11[%207, %c0_63] : memref<64x512xf32, #tpu.memory_space<vmem>>, vector<8x512xf32>
      %cst_64 = arith.constant dense<0.000000e+00> : vector<8x512xf32>
      %209 = tpu.matmul %202, %22, %cst_64 {dimension_numbers = #tpu.dot_dimension_numbers<[1], [0], [0], [1], [0, 0, 1, 1], [], []>} : vector<8x128xbf16>, vector<128x512xbf16>, vector<8x512xf32> -> vector<8x512xf32>
      %210 = arith.addf %208, %209 : vector<8x512xf32>
      %211 = vector.extract_strided_slice %210 {offsets = [0, 0], sizes = [8, 256], strides = [1, 1]} : vector<8x512xf32> to vector<8x256xf32>
      %212 = arith.negf %211 : vector<8x256xf32>
      %213 = math.exp %212 : vector<8x256xf32>
      %cst_65 = arith.constant 1.000000e+00 : f32
      %214 = vector.broadcast %cst_65 : f32 to vector<8x256xf32>
      %215 = arith.addf %214, %213 : vector<8x256xf32>
      %216 = arith.divf %214, %215 : vector<8x256xf32>
      %217 = vector.extract_strided_slice %210 {offsets = [0, 384], sizes = [8, 128], strides = [1, 1]} : vector<8x512xf32> to vector<8x128xf32>
      %218 = arith.negf %217 : vector<8x128xf32>
      %219 = math.exp %218 : vector<8x128xf32>
      %cst_66 = arith.constant 1.000000e+00 : f32
      %220 = vector.broadcast %cst_66 : f32 to vector<8x128xf32>
      %221 = arith.addf %220, %219 : vector<8x128xf32>
      %222 = arith.divf %220, %221 : vector<8x128xf32>
      %223 = vector.extract_strided_slice %210 {offsets = [0, 256], sizes = [8, 128], strides = [1, 1]} : vector<8x512xf32> to vector<8x128xf32>
      %224 = math.tanh %223 : vector<8x128xf32>
      %225 = vector.extract_strided_slice %216 {offsets = [0, 128], sizes = [8, 128], strides = [1, 1]} : vector<8x256xf32> to vector<8x128xf32>
      %226 = arith.mulf %225, %199 : vector<8x128xf32>
      %227 = vector.extract_strided_slice %216 {offsets = [0, 0], sizes = [8, 128], strides = [1, 1]} : vector<8x256xf32> to vector<8x128xf32>
      %228 = arith.mulf %227, %224 : vector<8x128xf32>
      %229 = arith.addf %226, %228 : vector<8x128xf32>
      %230 = math.tanh %229 : vector<8x128xf32>
      %231 = arith.mulf %222, %230 : vector<8x128xf32>
      %232 = arith.truncf %231 : vector<8x128xf32> to vector<8x128xbf16>
      %233 = arith.index_cast %206 : i32 to index
      %c0_67 = arith.constant 0 : index
      %234 = vector.load %arg12[%233, %c0_67] : memref<64x128xbf16, #tpu.memory_space<vmem>>, vector<8x128xbf16>
      tpu.vector_store %arg12[%233, %c0_67], %232 {strides = array<i32>} : memref<64x128xbf16, #tpu.memory_space<vmem>>, vector<8x128xbf16>,
      %c7_i32 = arith.constant 7 : i32
      %c8_i32_68 = arith.constant 8 : i32
      %235 = arith.muli %c7_i32, %c8_i32_68 : i32
      %236 = tpu.assume_multiple %235, 8 : i32
      %237 = arith.index_cast %236 : i32 to index
      %c0_69 = arith.constant 0 : index
      %238 = vector.load %arg11[%237, %c0_69] : memref<64x512xf32, #tpu.memory_space<vmem>>, vector<8x512xf32>
      %cst_70 = arith.constant dense<0.000000e+00> : vector<8x512xf32>
      %239 = tpu.matmul %232, %22, %cst_70 {dimension_numbers = #tpu.dot_dimension_numbers<[1], [0], [0], [1], [0, 0, 1, 1], [], []>} : vector<8x128xbf16>, vector<128x512xbf16>, vector<8x512xf32> -> vector<8x512xf32>
      %240 = arith.addf %238, %239 : vector<8x512xf32>
      %241 = vector.extract_strided_slice %240 {offsets = [0, 0], sizes = [8, 256], strides = [1, 1]} : vector<8x512xf32> to vector<8x256xf32>
      %242 = arith.negf %241 : vector<8x256xf32>
      %243 = math.exp %242 : vector<8x256xf32>
      %cst_71 = arith.constant 1.000000e+00 : f32
      %244 = vector.broadcast %cst_71 : f32 to vector<8x256xf32>
      %245 = arith.addf %244, %243 : vector<8x256xf32>
      %246 = arith.divf %244, %245 : vector<8x256xf32>
      %247 = vector.extract_strided_slice %240 {offsets = [0, 384], sizes = [8, 128], strides = [1, 1]} : vector<8x512xf32> to vector<8x128xf32>
      %248 = arith.negf %247 : vector<8x128xf32>
      %249 = math.exp %248 : vector<8x128xf32>
      %cst_72 = arith.constant 1.000000e+00 : f32
      %250 = vector.broadcast %cst_72 : f32 to vector<8x128xf32>
      %251 = arith.addf %250, %249 : vector<8x128xf32>
      %252 = arith.divf %250, %251 : vector<8x128xf32>
      %253 = vector.extract_strided_slice %240 {offsets = [0, 256], sizes = [8, 128], strides = [1, 1]} : vector<8x512xf32> to vector<8x128xf32>
      %254 = math.tanh %253 : vector<8x128xf32>
      %255 = vector.extract_strided_slice %246 {offsets = [0, 128], sizes = [8, 128], strides = [1, 1]} : vector<8x256xf32> to vector<8x128xf32>
      %256 = arith.mulf %255, %229 : vector<8x128xf32>
      %257 = vector.extract_strided_slice %246 {offsets = [0, 0], sizes = [8, 128], strides = [1, 1]} : vector<8x256xf32> to vector<8x128xf32>
      %258 = arith.mulf %257, %254 : vector<8x128xf32>
      %259 = arith.addf %256, %258 : vector<8x128xf32>
      %260 = math.tanh %259 : vector<8x128xf32>
      %261 = arith.mulf %252, %260 : vector<8x128xf32>
      %262 = arith.truncf %261 : vector<8x128xf32> to vector<8x128xbf16>
      %263 = arith.index_cast %236 : i32 to index
      %c0_73 = arith.constant 0 : index
      %264 = vector.load %arg12[%263, %c0_73] : memref<64x128xbf16, #tpu.memory_space<vmem>>, vector<8x128xbf16>
      tpu.vector_store %arg12[%263, %c0_73], %262 {strides = array<i32>} : memref<64x128xbf16, #tpu.memory_space<vmem>>, vector<8x128xbf16>,
      %c8_i32_74 = arith.constant 8 : i32
      %c0_75 = arith.constant 0 : index
      %c0_76 = arith.constant 0 : index
      %265 = vector.load %arg13[%c0_75, %c0_76] : memref<8x128xbf16, #tpu.memory_space<vmem>>, vector<8x128xbf16>
      tpu.vector_store %arg13[%c0_75, %c0_76], %262 {strides = array<i32>} : memref<8x128xbf16, #tpu.memory_space<vmem>>, vector<8x128xbf16>,
      %c0_77 = arith.constant 0 : index
      %c0_78 = arith.constant 0 : index
      %266 = vector.load %arg14[%c0_77, %c0_78] : memref<8x128xf32, #tpu.memory_space<vmem>>, vector<8x128xf32>
      tpu.vector_store %arg14[%c0_77, %c0_78], %259 {strides = array<i32>} : memref<8x128xf32, #tpu.memory_space<vmem>>, vector<8x128xf32>,
    } else {
    }
    %c0 = arith.constant 0 : index
    %c0_4 = arith.constant 0 : index
    %8 = vector.load %arg12[%c0, %c0_4] : memref<64x128xbf16, #tpu.memory_space<vmem>>, vector<64x128xbf16>
    %c0_5 = arith.constant 0 : index
    %c0_6 = arith.constant 0 : index
    %9 = vector.load %arg6[%c0_5, %c0_6] : memref<128x128xbf16, #tpu.memory_space<vmem>>, vector<128x128xbf16>
    %cst = arith.constant dense<0.000000e+00> : vector<64x128xf32>
    %10 = tpu.matmul %8, %9, %cst {dimension_numbers = #tpu.dot_dimension_numbers<[1], [0], [0], [1], [0, 0, 1, 1], [], []>} : vector<64x128xbf16>, vector<128x128xbf16>, vector<64x128xf32> -> vector<64x128xf32>
    %c0_7 = arith.constant 0 : index
    %c0_8 = arith.constant 0 : index
    %11 = vector.load %arg7[%c0_7, %c0_8] : memref<1x128xf32, #tpu.memory_space<vmem>>, vector<1x128xf32>
    %12 = vector.broadcast %11 : vector<1x128xf32> to vector<64x128xf32>
    %13 = arith.addf %10, %12 : vector<64x128xf32>
    %c0_9 = arith.constant 0 : index
    %c0_10 = arith.constant 0 : index
    %14 = vector.load %arg8[%c0_9, %c0_10] : memref<64x128xf32, #tpu.memory_space<vmem>>, vector<64x128xf32>
    tpu.vector_store %arg8[%c0_9, %c0_10], %13 {strides = array<i32>} : memref<64x128xf32, #tpu.memory_space<vmem>>, vector<64x128xf32>,
    return
  }
  func.func @transform_0(%arg0: i32, %arg1: i32) -> (i32, i32) {
    %c0_i32 = arith.constant 0 : i32
    %c0_i32_0 = arith.constant 0 : i32
    return %arg0, %c0_i32 : i32, i32
  }
  func.func @transform_3(%arg0: i32, %arg1: i32) -> (i32, i32) {
    %c0_i32 = arith.constant 0 : i32
    %c0_i32_0 = arith.constant 0 : i32
    %c0_i32_1 = arith.constant 0 : i32
    return %c0_i32, %c0_i32_0 : i32, i32
  }
  func.func @transform_4(%arg0: i32, %arg1: i32) -> (i32, i32) {
    %c0_i32 = arith.constant 0 : i32
    %c0_i32_0 = arith.constant 0 : i32
    return %c0_i32, %arg1 : i32, i32
  }
  func.func @transform_5(%arg0: i32, %arg1: i32) -> (i32, i32) {
    %c0_i32 = arith.constant 0 : i32
    %c0_i32_0 = arith.constant 0 : i32
    return %c0_i32, %arg1 : i32, i32
  }
  func.func @transform_6(%arg0: i32, %arg1: i32) -> (i32, i32) {
    %c0_i32 = arith.constant 0 : i32
    return %arg0, %arg1 : i32, i32
  }
}

</mosaic_0001>

<llo_original>
// kernel: type_predictor_forward.1
$region0: #{type_predictor_forward.1}
  #allocation0 [shape = 'u32[]', space=smem, size = 0x4, offset = 0x4, fixed_abs, tag = 'smem constant byte address 0x4 - core index']
  #allocation1 [shape = 'u32[144,128]{1,0:T(1,128)}', space=vmem, size = 0x12000, scoped, tag = 'internal scratch']
  #allocation2 [shape = 'bf16[128,512]{1,0:T(8,128)(2,1)}', space=vmem, size = 0x20000, scoped, tag = 'scratch operand']
  #allocation3 [shape = 'bf16[128,512]{1,0:T(8,128)(2,1)}', space=vmem, size = 0x20000, scoped, tag = 'scratch operand']
  #allocation4 [shape = 'f32[64,512]{1,0:T(8,128)}', space=vmem, size = 0x20000, scoped, tag = 'scratch operand']
  #allocation5 [shape = 'bf16[64,128]{1,0:T(8,128)(2,1)}', space=vmem, size = 0x4000, scoped, tag = 'scratch operand']
  #allocation6 [shape = 'bf16[8,128]{1,0:T(8,128)(2,1)}', space=vmem, size = 0x800, scoped, tag = 'scratch operand']
  #allocation7 [shape = 'f32[8,128]{1,0:T(8,128)}', space=vmem, size = 0x1000, scoped, tag = 'scratch operand']
  #allocation9 [shape = 's32[]', space=sflag, size = 0x4, offset = 0, fixed_abs, tag = 'sflag constant byte address 0x0 - dummy sync flag']
  #allocation11 [shape = 's32[]', space=sflag, size = 0x4, offset = 0, fixed_abs, tag = 'sflag constant byte address 0x0 - dummy sync flag']
  %s0 = inlined_call_operand.vmem [shape: bf16[64,128], index: 0, kind: input, shape index: {}]
  %s1 = inlined_call_operand.vmem [shape: bf16[128,512], index: 1, kind: input, shape index: {}]
  %s2 = inlined_call_operand.vmem [shape: bf16[128,512], index: 2, kind: input, shape index: {}]
  %s3 = inlined_call_operand.vmem [shape: f32[1,512], index: 3, kind: input, shape index: {}]
  %s4 = inlined_call_operand.vmem [shape: bf16[128,128], index: 4, kind: input, shape index: {}]
  %s5 = inlined_call_operand.vmem [shape: f32[1,128], index: 5, kind: input, shape index: {}]
  %s6 = inlined_call_operand.vmem [shape: f32[64,128], index: 6, kind: output, shape index: {}]
  %s7 = sld [smem:[#allocation0]]
  $region104: #{type_predictor_forward.1} parent=0
    _
  %s9 = ssub.s32 1, %s7
  %s10 = scalar_select 0, %s9, %s7
  // Predicated region
  $region2: #{type_predictor_forward.1} parent=0 // pred_check
    _
  $region3: #{type_predictor_forward.1} parent=0 // pred_check_branch
    %12 = sbr.rel (0) target = $region5
  $region4: #{type_predictor_forward.1} parent=0 // pred_region
    _
  $region5: #{type_predictor_forward.1} parent=0 // pred_fallthru
    _
  // Predicated region
  $region6: #{type_predictor_forward.1} parent=0 // pred_check
    _
  $region7: #{type_predictor_forward.1} parent=0 // pred_check_branch
    %14 = sbr.rel (0) target = $region9
  $region8: #{type_predictor_forward.1} parent=0 // pred_region
    _
  $region9: #{type_predictor_forward.1} parent=0 // pred_fallthru
    _
  // Predicated region
  $region10: #{type_predictor_forward.1} parent=0 // pred_check
    _
  $region11: #{type_predictor_forward.1} parent=0 // pred_check_branch
    %16 = sbr.rel (0) target = $region13
  $region12: #{type_predictor_forward.1} parent=0 // pred_region
    _
  $region13: #{type_predictor_forward.1} parent=0 // pred_fallthru
    _
  // Predicated region
  $region14: #{type_predictor_forward.1} parent=0 // pred_check
    _
  $region15: #{type_predictor_forward.1} parent=0 // pred_check_branch
    %18 = sbr.rel (0) target = $region17
  $region16: #{type_predictor_forward.1} parent=0 // pred_region
    _
  $region17: #{type_predictor_forward.1} parent=0 // pred_fallthru
    _
  %p20 = scmp.eq.s32.totalorder 0, 0
  %p21 = scmp.eq.s32.totalorder 0, 0
  %p22 = pnand %p20, %p21
  %p23 = pneg %p22
  // Predicated region
  $region18: #{type_predictor_forward.1} parent=0 // pred_check
    _
  $region19: #{type_predictor_forward.1} parent=0 // pred_check_branch
    %25 = sbr.rel (%p22) target = $region21
  $region20: #{type_predictor_forward.1} parent=0 // pred_region
    $region22: #{type_predictor_forward.1} parent=20
      #allocation8 [shape = 's32[1]{0}', space=sflag, size = 0x4, scoped, tag = 'scoped memory for type_predictor_forward.1']
      %p27 = scmp.lt.u32.totalorder 256, 8
      %p28 = pneg %p27
      // Predicated region
      $region23: #{type_predictor_forward.1} parent=22 // pred_check
        _
      $region24: #{type_predictor_forward.1} parent=22 // pred_check_branch
        %30 = sbr.rel (%p27) target = $region26
      $region25: #{type_predictor_forward.1} parent=22 // pred_region
        %s46 = sand.u32 256, 7
        %p47 = scmp.eq.s32.totalorder %s46, 0
        // Predicated region
        $region38: #{type_predictor_forward.1} parent=25 // pred_check
          %p48 = pneg %p47
        $region39: #{type_predictor_forward.1} parent=25 // pred_check_branch
          %50 = sbr.rel (%p48) target = $region41
        $region40: #{type_predictor_forward.1} parent=25 // pred_region
          loop: start=0, step=1, limit=1
          $region42: #{type_predictor_forward.1} parent=40 // loop_pre_header
            _
          $region43: #{type_predictor_forward.1} parent=40 // loop_header
            %s52 = sphi 0, %s56
            %p53 = scmp.ge.s32.totalorder %s52, 1
            %s57 = sphi %s1, %s1
            %s58 = sphi [#allocation2], [#allocation2]
          $region44: #{type_predictor_forward.1} parent=40 // loop_header_branch
            %55 = sbr.rel (%p53) target = $region48
          $region45: #{type_predictor_forward.1} parent=40 // loop_body
            %v59 = vld [vmem:[%s57] sm:$0xff]
            %60 = vst [vmem:[%s58] sm:$0xff] %v59
            %v61 = vld [vmem:[%s57 + $0x8] sm:$0xff]
            %62 = vst [vmem:[%s58 + $0x8] sm:$0xff] %v61
            %v63 = vld [vmem:[%s57 + $0x10] sm:$0xff]
            %64 = vst [vmem:[%s58 + $0x10] sm:$0xff] %v63
            %v65 = vld [vmem:[%s57 + $0x18] sm:$0xff]
            %66 = vst [vmem:[%s58 + $0x18] sm:$0xff] %v65
            %v67 = vld [vmem:[%s57 + $0x20] sm:$0xff]
            %68 = vst [vmem:[%s58 + $0x20] sm:$0xff] %v67
            %v69 = vld [vmem:[%s57 + $0x28] sm:$0xff]
            %70 = vst [vmem:[%s58 + $0x28] sm:$0xff] %v69
            %v71 = vld [vmem:[%s57 + $0x30] sm:$0xff]
            %72 = vst [vmem:[%s58 + $0x30] sm:$0xff] %v71
            %v73 = vld [vmem:[%s57 + $0x38] sm:$0xff]
            %74 = vst [vmem:[%s58 + $0x38] sm:$0xff] %v73
            %v75 = vld [vmem:[%s57 + $0x40] sm:$0xff]
            %76 = vst [vmem:[%s58 + $0x40] sm:$0xff] %v75
            %v77 = vld [vmem:[%s57 + $0x48] sm:$0xff]
            %78 = vst [vmem:[%s58 + $0x48] sm:$0xff] %v77
            %v79 = vld [vmem:[%s57 + $0x50] sm:$0xff]
            %80 = vst [vmem:[%s58 + $0x50] sm:$0xff] %v79
            %v81 = vld [vmem:[%s57 + $0x58] sm:$0xff]
            %82 = vst [vmem:[%s58 + $0x58] sm:$0xff] %v81
            %v83 = vld [vmem:[%s57 + $0x60] sm:$0xff]
            %84 = vst [vmem:[%s58 + $0x60] sm:$0xff] %v83
            %v85 = vld [vmem:[%s57 + $0x68] sm:$0xff]
            %86 = vst [vmem:[%s58 + $0x68] sm:$0xff] %v85
            %v87 = vld [vmem:[%s57 + $0x70] sm:$0xff]
            %88 = vst [vmem:[%s58 + $0x70] sm:$0xff] %v87
            %v89 = vld [vmem:[%s57 + $0x78] sm:$0xff]
            %90 = vst [vmem:[%s58 + $0x78] sm:$0xff] %v89
            %v91 = vld [vmem:[%s57 + $0x80] sm:$0xff]
            %92 = vst [vmem:[%s58 + $0x80] sm:$0xff] %v91
            %v93 = vld [vmem:[%s57 + $0x88] sm:$0xff]
            %94 = vst [vmem:[%s58 + $0x88] sm:$0xff] %v93
            %v95 = vld [vmem:[%s57 + $0x90] sm:$0xff]
            %96 = vst [vmem:[%s58 + $0x90] sm:$0xff] %v95
            %v97 = vld [vmem:[%s57 + $0x98] sm:$0xff]
            %98 = vst [vmem:[%s58 + $0x98] sm:$0xff] %v97
            %v99 = vld [vmem:[%s57 + $0xa0] sm:$0xff]
            %100 = vst [vmem:[%s58 + $0xa0] sm:$0xff] %v99
            %v101 = vld [vmem:[%s57 + $0xa8] sm:$0xff]
            %102 = vst [vmem:[%s58 + $0xa8] sm:$0xff] %v101
            %v103 = vld [vmem:[%s57 + $0xb0] sm:$0xff]
            %104 = vst [vmem:[%s58 + $0xb0] sm:$0xff] %v103
            %v105 = vld [vmem:[%s57 + $0xb8] sm:$0xff]
            %106 = vst [vmem:[%s58 + $0xb8] sm:$0xff] %v105
            %v107 = vld [vmem:[%s57 + $0xc0] sm:$0xff]
            %108 = vst [vmem:[%s58 + $0xc0] sm:$0xff] %v107
            %v109 = vld [vmem:[%s57 + $0xc8] sm:$0xff]
            %110 = vst [vmem:[%s58 + $0xc8] sm:$0xff] %v109
            %v111 = vld [vmem:[%s57 + $0xd0] sm:$0xff]
            %112 = vst [vmem:[%s58 + $0xd0] sm:$0xff] %v111
            %v113 = vld [vmem:[%s57 + $0xd8] sm:$0xff]
            %114 = vst [vmem:[%s58 + $0xd8] sm:$0xff] %v113
            %v115 = vld [vmem:[%s57 + $0xe0] sm:$0xff]
            %116 = vst [vmem:[%s58 + $0xe0] sm:$0xff] %v115
            %v117 = vld [vmem:[%s57 + $0xe8] sm:$0xff]
            %118 = vst [vmem:[%s58 + $0xe8] sm:$0xff] %v117
            %v119 = vld [vmem:[%s57 + $0xf0] sm:$0xff]
            %120 = vst [vmem:[%s58 + $0xf0] sm:$0xff] %v119
            %v121 = vld [vmem:[%s57 + $0xf8] sm:$0xff]
            %122 = vst [vmem:[%s58 + $0xf8] sm:$0xff] %v121
          $region46: #{type_predictor_forward.1} parent=40 // loop_footer
            %s56 = sadd.s32 1, %s52
          $region47: #{type_predictor_forward.1} parent=40 // loop_footer_branch
            %51 = sbr.rel target = $region43
          $region48: #{type_predictor_forward.1} parent=40 // loop_exit
            _
        $region41: #{type_predictor_forward.1} parent=25 // pred_fallthru
          _
        %p123 = pneg %p47
        // Predicated region
        $region49: #{type_predictor_forward.1} parent=25 // pred_check
          _
        $region50: #{type_predictor_forward.1} parent=25 // pred_check_branch
          %125 = sbr.rel (%p47) target = $region52
        $region51: #{type_predictor_forward.1} parent=25 // pred_region
          %s126 = sand.u32 256, 7
        $region52: #{type_predictor_forward.1} parent=25 // pred_fallthru
          _
      $region26: #{type_predictor_forward.1} parent=22 // pred_fallthru
        _
      // Predicated region
      $region27: #{type_predictor_forward.1} parent=22 // pred_check
        %p31 = pneg %p27
      $region28: #{type_predictor_forward.1} parent=22 // pred_check_branch
        %33 = sbr.rel (%p31) target = $region30
      $region29: #{type_predictor_forward.1} parent=22 // pred_region
        %s34 = sshll.u32 1, 256
        %s35 = ssub.s32 %s34, 1
        loop: start=0, step=1, limit=1
        $region31: #{type_predictor_forward.1} parent=29 // loop_pre_header
          _
        $region32: #{type_predictor_forward.1} parent=29 // loop_header
          %s37 = sphi 0, %s41
          %p38 = scmp.ge.s32.totalorder %s37, 1
          %s42 = sphi %s1, %s1
          %s43 = sphi [#allocation2], [#allocation2]
        $region33: #{type_predictor_forward.1} parent=29 // loop_header_branch
          %40 = sbr.rel (%p38) target = $region37
        $region34: #{type_predictor_forward.1} parent=29 // loop_body
          %v44 = vld [vmem:[%s42] sm:%s35]
          %45 = vst [vmem:[%s43] sm:%s35] %v44
        $region35: #{type_predictor_forward.1} parent=29 // loop_footer
          %s41 = sadd.s32 1, %s37
        $region36: #{type_predictor_forward.1} parent=29 // loop_footer_branch
          %36 = sbr.rel target = $region32
        $region37: #{type_predictor_forward.1} parent=29 // loop_exit
          _
      $region30: #{type_predictor_forward.1} parent=22 // pred_fallthru
        _
      // Predicated region
      $region53: #{type_predictor_forward.1} parent=22 // pred_check
        _
      $region54: #{type_predictor_forward.1} parent=22 // pred_check_branch
        %129 = sbr.rel (0) target = $region56
      $region55: #{type_predictor_forward.1} parent=22 // pred_region
        %130 = vsyncadd [#allocation8], 4096
      $region56: #{type_predictor_forward.1} parent=22 // pred_fallthru
        _
      %s131 = smul.u32 4, 16
      %s132 = smul.u32 %s131, 4
      %s133 = sshll.u32 %s132, 4
      %134 = dma.done [#allocation8], %s133
    $region57: #{type_predictor_forward.1} parent=20
      #allocation10 [shape = 's32[1]{0}', space=sflag, size = 0x4, scoped, tag = 'scoped memory for type_predictor_forward.1']
      %p136 = scmp.lt.u32.totalorder 256, 8
      %p137 = pneg %p136
      // Predicated region
      $region58: #{type_predictor_forward.1} parent=57 // pred_check
        _
      $region59: #{type_predictor_forward.1} parent=57 // pred_check_branch
        %139 = sbr.rel (%p136) target = $region61
      $region60: #{type_predictor_forward.1} parent=57 // pred_region
        %s155 = sand.u32 256, 7
        %p156 = scmp.eq.s32.totalorder %s155, 0
        // Predicated region
        $region73: #{type_predictor_forward.1} parent=60 // pred_check
          %p157 = pneg %p156
        $region74: #{type_predictor_forward.1} parent=60 // pred_check_branch
          %159 = sbr.rel (%p157) target = $region76
        $region75: #{type_predictor_forward.1} parent=60 // pred_region
          loop: start=0, step=1, limit=1
          $region77: #{type_predictor_forward.1} parent=75 // loop_pre_header
            _
          $region78: #{type_predictor_forward.1} parent=75 // loop_header
            %s161 = sphi 0, %s165
            %p162 = scmp.ge.s32.totalorder %s161, 1
            %s166 = sphi %s2, %s2
            %s167 = sphi [#allocation3], [#allocation3]
          $region79: #{type_predictor_forward.1} parent=75 // loop_header_branch
            %164 = sbr.rel (%p162) target = $region83
          $region80: #{type_predictor_forward.1} parent=75 // loop_body
            %v168 = vld [vmem:[%s166] sm:$0xff]
            %169 = vst [vmem:[%s167] sm:$0xff] %v168
            %v170 = vld [vmem:[%s166 + $0x8] sm:$0xff]
            %171 = vst [vmem:[%s167 + $0x8] sm:$0xff] %v170
            %v172 = vld [vmem:[%s166 + $0x10] sm:$0xff]
            %173 = vst [vmem:[%s167 + $0x10] sm:$0xff] %v172
            %v174 = vld [vmem:[%s166 + $0x18] sm:$0xff]
            %175 = vst [vmem:[%s167 + $0x18] sm:$0xff] %v174
            %v176 = vld [vmem:[%s166 + $0x20] sm:$0xff]
            %177 = vst [vmem:[%s167 + $0x20] sm:$0xff] %v176
            %v178 = vld [vmem:[%s166 + $0x28] sm:$0xff]
            %179 = vst [vmem:[%s167 + $0x28] sm:$0xff] %v178
            %v180 = vld [vmem:[%s166 + $0x30] sm:$0xff]
            %181 = vst [vmem:[%s167 + $0x30] sm:$0xff] %v180
            %v182 = vld [vmem:[%s166 + $0x38] sm:$0xff]
            %183 = vst [vmem:[%s167 + $0x38] sm:$0xff] %v182
            %v184 = vld [vmem:[%s166 + $0x40] sm:$0xff]
            %185 = vst [vmem:[%s167 + $0x40] sm:$0xff] %v184
            %v186 = vld [vmem:[%s166 + $0x48] sm:$0xff]
            %187 = vst [vmem:[%s167 + $0x48] sm:$0xff] %v186
            %v188 = vld [vmem:[%s166 + $0x50] sm:$0xff]
            %189 = vst [vmem:[%s167 + $0x50] sm:$0xff] %v188
            %v190 = vld [vmem:[%s166 + $0x58] sm:$0xff]
            %191 = vst [vmem:[%s167 + $0x58] sm:$0xff] %v190
            %v192 = vld [vmem:[%s166 + $0x60] sm:$0xff]
            %193 = vst [vmem:[%s167 + $0x60] sm:$0xff] %v192
            %v194 = vld [vmem:[%s166 + $0x68] sm:$0xff]
            %195 = vst [vmem:[%s167 + $0x68] sm:$0xff] %v194
            %v196 = vld [vmem:[%s166 + $0x70] sm:$0xff]
            %197 = vst [vmem:[%s167 + $0x70] sm:$0xff] %v196
            %v198 = vld [vmem:[%s166 + $0x78] sm:$0xff]
            %199 = vst [vmem:[%s167 + $0x78] sm:$0xff] %v198
            %v200 = vld [vmem:[%s166 + $0x80] sm:$0xff]
            %201 = vst [vmem:[%s167 + $0x80] sm:$0xff] %v200
            %v202 = vld [vmem:[%s166 + $0x88] sm:$0xff]
            %203 = vst [vmem:[%s167 + $0x88] sm:$0xff] %v202
            %v204 = vld [vmem:[%s166 + $0x90] sm:$0xff]
            %205 = vst [vmem:[%s167 + $0x90] sm:$0xff] %v204
            %v206 = vld [vmem:[%s166 + $0x98] sm:$0xff]
            %207 = vst [vmem:[%s167 + $0x98] sm:$0xff] %v206
            %v208 = vld [vmem:[%s166 + $0xa0] sm:$0xff]
            %209 = vst [vmem:[%s167 + $0xa0] sm:$0xff] %v208
            %v210 = vld [vmem:[%s166 + $0xa8] sm:$0xff]
            %211 = vst [vmem:[%s167 + $0xa8] sm:$0xff] %v210
            %v212 = vld [vmem:[%s166 + $0xb0] sm:$0xff]
            %213 = vst [vmem:[%s167 + $0xb0] sm:$0xff] %v212
            %v214 = vld [vmem:[%s166 + $0xb8] sm:$0xff]
            %215 = vst [vmem:[%s167 + $0xb8] sm:$0xff] %v214
            %v216 = vld [vmem:[%s166 + $0xc0] sm:$0xff]
            %217 = vst [vmem:[%s167 + $0xc0] sm:$0xff] %v216
            %v218 = vld [vmem:[%s166 + $0xc8] sm:$0xff]
            %219 = vst [vmem:[%s167 + $0xc8] sm:$0xff] %v218
            %v220 = vld [vmem:[%s166 + $0xd0] sm:$0xff]
            %221 = vst [vmem:[%s167 + $0xd0] sm:$0xff] %v220
            %v222 = vld [vmem:[%s166 + $0xd8] sm:$0xff]
            %223 = vst [vmem:[%s167 + $0xd8] sm:$0xff] %v222
            %v224 = vld [vmem:[%s166 + $0xe0] sm:$0xff]
            %225 = vst [vmem:[%s167 + $0xe0] sm:$0xff] %v224
            %v226 = vld [vmem:[%s166 + $0xe8] sm:$0xff]
            %227 = vst [vmem:[%s167 + $0xe8] sm:$0xff] %v226
            %v228 = vld [vmem:[%s166 + $0xf0] sm:$0xff]
            %229 = vst [vmem:[%s167 + $0xf0] sm:$0xff] %v228
            %v230 = vld [vmem:[%s166 + $0xf8] sm:$0xff]
            %231 = vst [vmem:[%s167 + $0xf8] sm:$0xff] %v230
          $region81: #{type_predictor_forward.1} parent=75 // loop_footer
            %s165 = sadd.s32 1, %s161
          $region82: #{type_predictor_forward.1} parent=75 // loop_footer_branch
            %160 = sbr.rel target = $region78
          $region83: #{type_predictor_forward.1} parent=75 // loop_exit
            _
        $region76: #{type_predictor_forward.1} parent=60 // pred_fallthru
          _
        %p232 = pneg %p156
        // Predicated region
        $region84: #{type_predictor_forward.1} parent=60 // pred_check
          _
        $region85: #{type_predictor_forward.1} parent=60 // pred_check_branch
          %234 = sbr.rel (%p156) target = $region87
        $region86: #{type_predictor_forward.1} parent=60 // pred_region
          %s235 = sand.u32 256, 7
        $region87: #{type_predictor_forward.1} parent=60 // pred_fallthru
          _
      $region61: #{type_predictor_forward.1} parent=57 // pred_fallthru
        _
      // Predicated region
      $region62: #{type_predictor_forward.1} parent=57 // pred_check
        %p140 = pneg %p136
      $region63: #{type_predictor_forward.1} parent=57 // pred_check_branch
        %142 = sbr.rel (%p140) target = $region65
      $region64: #{type_predictor_forward.1} parent=57 // pred_region
        %s143 = sshll.u32 1, 256
        %s144 = ssub.s32 %s143, 1
        loop: start=0, step=1, limit=1
        $region66: #{type_predictor_forward.1} parent=64 // loop_pre_header
          _
        $region67: #{type_predictor_forward.1} parent=64 // loop_header
          %s146 = sphi 0, %s150
          %p147 = scmp.ge.s32.totalorder %s146, 1
          %s151 = sphi %s2, %s2
          %s152 = sphi [#allocation3], [#allocation3]
        $region68: #{type_predictor_forward.1} parent=64 // loop_header_branch
          %149 = sbr.rel (%p147) target = $region72
        $region69: #{type_predictor_forward.1} parent=64 // loop_body
          %v153 = vld [vmem:[%s151] sm:%s144]
          %154 = vst [vmem:[%s152] sm:%s144] %v153
        $region70: #{type_predictor_forward.1} parent=64 // loop_footer
          %s150 = sadd.s32 1, %s146
        $region71: #{type_predictor_forward.1} parent=64 // loop_footer_branch
          %145 = sbr.rel target = $region67
        $region72: #{type_predictor_forward.1} parent=64 // loop_exit
          _
      $region65: #{type_predictor_forward.1} parent=57 // pred_fallthru
        _
      // Predicated region
      $region88: #{type_predictor_forward.1} parent=57 // pred_check
        _
      $region89: #{type_predictor_forward.1} parent=57 // pred_check_branch
        %238 = sbr.rel (0) target = $region91
      $region90: #{type_predictor_forward.1} parent=57 // pred_region
        %239 = vsyncadd [#allocation10], 4096
      $region91: #{type_predictor_forward.1} parent=57 // pred_fallthru
        _
      %s240 = smul.u32 4, 16
      %s241 = smul.u32 %s240, 4
      %s242 = sshll.u32 %s241, 4
      %243 = dma.done [#allocation10], %s242
    %244 = vst [vmem:[#allocation6] sm:$0xf] 0
    %245 = vst [vmem:[#allocation7] sm:$0xff] 0.0
  $region21: #{type_predictor_forward.1} parent=0 // pred_fallthru
    _
  // Predicated region
  $region92: #{type_predictor_forward.1} parent=0 // pred_check
    %p246 = pneg %p21
  $region93: #{type_predictor_forward.1} parent=0 // pred_check_branch
    %248 = sbr.rel (%p246) target = $region95
  $region94: #{type_predictor_forward.1} parent=0 // pred_region
    %v249 = vld [vmem:[%s0] sm:$0xf]
    %v250 = vld [vmem:[%s0 + $0x4] sm:$0xf]
    %v251 = vld [vmem:[%s0 + $0x8] sm:$0xf]
    %v252 = vld [vmem:[%s0 + $0xc] sm:$0xf]
    %v253 = vld [vmem:[%s0 + $0x10] sm:$0xf]
    %v254 = vld [vmem:[%s0 + $0x14] sm:$0xf]
    %v255 = vld [vmem:[%s0 + $0x18] sm:$0xf]
    %v256 = vld [vmem:[%s0 + $0x1c] sm:$0xf]
    %v257 = vld [vmem:[#allocation2] sm:$0xff]
    %v258 = vld [vmem:[#allocation2 + $0x8] sm:$0xff]
    %v259 = vld [vmem:[#allocation2 + $0x10] sm:$0xff]
    %v260 = vld [vmem:[#allocation2 + $0x18] sm:$0xff]
    %v261 = vld [vmem:[#allocation2 + $0x20] sm:$0xff]
    %v262 = vld [vmem:[#allocation2 + $0x28] sm:$0xff]
    %v263 = vld [vmem:[#allocation2 + $0x30] sm:$0xff]
    %v264 = vld [vmem:[#allocation2 + $0x38] sm:$0xff]
    %v265 = vld [vmem:[#allocation2 + $0x40] sm:$0xff]
    %v266 = vld [vmem:[#allocation2 + $0x48] sm:$0xff]
    %v267 = vld [vmem:[#allocation2 + $0x50] sm:$0xff]
    %v268 = vld [vmem:[#allocation2 + $0x58] sm:$0xff]
    %v269 = vld [vmem:[#allocation2 + $0x60] sm:$0xff]
    %v270 = vld [vmem:[#allocation2 + $0x68] sm:$0xff]
    %v271 = vld [vmem:[#allocation2 + $0x70] sm:$0xff]
    %v272 = vld [vmem:[#allocation2 + $0x78] sm:$0xff]
    %v273 = vld [vmem:[#allocation2 + $0x80] sm:$0xff]
    %v274 = vld [vmem:[#allocation2 + $0x88] sm:$0xff]
    %v275 = vld [vmem:[#allocation2 + $0x90] sm:$0xff]
    %v276 = vld [vmem:[#allocation2 + $0x98] sm:$0xff]
    %v277 = vld [vmem:[#allocation2 + $0xa0] sm:$0xff]
    %v278 = vld [vmem:[#allocation2 + $0xa8] sm:$0xff]
    %v279 = vld [vmem:[#allocation2 + $0xb0] sm:$0xff]
    %v280 = vld [vmem:[#allocation2 + $0xb8] sm:$0xff]
    %v281 = vld [vmem:[#allocation2 + $0xc0] sm:$0xff]
    %v282 = vld [vmem:[#allocation2 + $0xc8] sm:$0xff]
    %v283 = vld [vmem:[#allocation2 + $0xd0] sm:$0xff]
    %v284 = vld [vmem:[#allocation2 + $0xd8] sm:$0xff]
    %v285 = vld [vmem:[#allocation2 + $0xe0] sm:$0xff]
    %v286 = vld [vmem:[#allocation2 + $0xe8] sm:$0xff]
    %v287 = vld [vmem:[#allocation2 + $0xf0] sm:$0xff]
    %v288 = vld [vmem:[#allocation2 + $0xf8] sm:$0xff]
    %v289 = vld [vmem:[%s3] sm:$0xf]
    %v291 = vlaneseq
    %v292 = vshrl.u32 %v291, 7
    %v293 = vsub.s32 0, %v292
    %v294 = vrot.slane %v289, %v293
    %v295 = vlaneseq
    %v296 = vshrl.u32 %v295, 7
    %v297 = vsub.s32 1, %v296
    %v298 = vrot.slane %v289, %v297
    %v299 = vlaneseq
    %v300 = vshrl.u32 %v299, 7
    %v301 = vsub.s32 2, %v300
    %v302 = vrot.slane %v289, %v301
    %v303 = vlaneseq
    %v304 = vshrl.u32 %v303, 7
    %v305 = vsub.s32 3, %v304
    %v306 = vrot.slane %v289, %v305
    %v319 = vunpack.c.l.b16 %v249
    %v320 = vunpack.c.l.b16 %v250
    %v321 = vunpack.c.l.b16 %v251
    %v322 = vunpack.c.l.b16 %v252
    %v323 = vunpack.c.l.b16 %v253
    %v324 = vunpack.c.l.b16 %v254
    %v325 = vunpack.c.l.b16 %v255
    %v326 = vunpack.c.l.b16 %v256
    %v327 = vpack.c.b16 %v320, %v319
    %v328 = vpack.c.b16 %v322, %v321
    %v329 = vpack.c.b16 %v324, %v323
    %v330 = vpack.c.b16 %v326, %v325
    %v367 = vunpack.c.l.b16 %v257
    %v368 = vunpack.c.h.b16 %v257
    %v369 = vunpack.c.l.b16 %v258
    %v370 = vunpack.c.h.b16 %v258
    %v371 = vunpack.c.l.b16 %v259
    %v372 = vunpack.c.h.b16 %v259
    %v373 = vunpack.c.l.b16 %v260
    %v374 = vunpack.c.h.b16 %v260
    %v375 = vunpack.c.l.b16 %v261
    %v376 = vunpack.c.h.b16 %v261
    %v377 = vunpack.c.l.b16 %v262
    %v378 = vunpack.c.h.b16 %v262
    %v379 = vunpack.c.l.b16 %v263
    %v380 = vunpack.c.h.b16 %v263
    %v381 = vunpack.c.l.b16 %v264
    %v382 = vunpack.c.h.b16 %v264
    %v383 = vunpack.c.l.b16 %v265
    %v384 = vunpack.c.h.b16 %v265
    %v385 = vunpack.c.l.b16 %v266
    %v386 = vunpack.c.h.b16 %v266
    %v387 = vunpack.c.l.b16 %v267
    %v388 = vunpack.c.h.b16 %v267
    %v389 = vunpack.c.l.b16 %v268
    %v390 = vunpack.c.h.b16 %v268
    %v391 = vunpack.c.l.b16 %v269
    %v392 = vunpack.c.h.b16 %v269
    %v393 = vunpack.c.l.b16 %v270
    %v394 = vunpack.c.h.b16 %v270
    %v395 = vunpack.c.l.b16 %v271
    %v396 = vunpack.c.h.b16 %v271
    %v397 = vunpack.c.l.b16 %v272
    %v398 = vunpack.c.h.b16 %v272
    %v399 = vunpack.c.l.b16 %v273
    %v400 = vunpack.c.h.b16 %v273
    %v401 = vunpack.c.l.b16 %v274
    %v402 = vunpack.c.h.b16 %v274
    %v403 = vunpack.c.l.b16 %v275
    %v404 = vunpack.c.h.b16 %v275
    %v405 = vunpack.c.l.b16 %v276
    %v406 = vunpack.c.h.b16 %v276
    %v407 = vunpack.c.l.b16 %v277
    %v408 = vunpack.c.h.b16 %v277
    %v409 = vunpack.c.l.b16 %v278
    %v410 = vunpack.c.h.b16 %v278
    %v411 = vunpack.c.l.b16 %v279
    %v412 = vunpack.c.h.b16 %v279
    %v413 = vunpack.c.l.b16 %v280
    %v414 = vunpack.c.h.b16 %v280
    %v415 = vunpack.c.l.b16 %v281
    %v416 = vunpack.c.h.b16 %v281
    %v417 = vunpack.c.l.b16 %v282
    %v418 = vunpack.c.h.b16 %v282
    %v419 = vunpack.c.l.b16 %v283
    %v420 = vunpack.c.h.b16 %v283
    %v421 = vunpack.c.l.b16 %v284
    %v422 = vunpack.c.h.b16 %v284
    %v423 = vunpack.c.l.b16 %v285
    %v424 = vunpack.c.h.b16 %v285
    %v425 = vunpack.c.l.b16 %v286
    %v426 = vunpack.c.h.b16 %v286
    %v427 = vunpack.c.l.b16 %v287
    %v428 = vunpack.c.h.b16 %v287
    %v429 = vunpack.c.l.b16 %v288
    %v430 = vunpack.c.h.b16 %v288
    %v431 = vpack.c.b16 %v371, %v367
    %v432 = vpack.c.b16 %v372, %v368
    %v433 = vpack.c.b16 %v373, %v369
    %v434 = vpack.c.b16 %v374, %v370
    %v435 = vpack.c.b16 %v379, %v375
    %v436 = vpack.c.b16 %v380, %v376
    %v437 = vpack.c.b16 %v381, %v377
    %v438 = vpack.c.b16 %v382, %v378
    %v439 = vpack.c.b16 %v387, %v383
    %v440 = vpack.c.b16 %v388, %v384
    %v441 = vpack.c.b16 %v389, %v385
    %v442 = vpack.c.b16 %v390, %v386
    %v443 = vpack.c.b16 %v395, %v391
    %v444 = vpack.c.b16 %v396, %v392
    %v445 = vpack.c.b16 %v397, %v393
    %v446 = vpack.c.b16 %v398, %v394
    %v447 = vpack.c.b16 %v403, %v399
    %v448 = vpack.c.b16 %v404, %v400
    %v449 = vpack.c.b16 %v405, %v401
    %v450 = vpack.c.b16 %v406, %v402
    %v451 = vpack.c.b16 %v411, %v407
    %v452 = vpack.c.b16 %v412, %v408
    %v453 = vpack.c.b16 %v413, %v409
    %v454 = vpack.c.b16 %v414, %v410
    %v455 = vpack.c.b16 %v419, %v415
    %v456 = vpack.c.b16 %v420, %v416
    %v457 = vpack.c.b16 %v421, %v417
    %v458 = vpack.c.b16 %v422, %v418
    %v459 = vpack.c.b16 %v427, %v423
    %v460 = vpack.c.b16 %v428, %v424
    %v461 = vpack.c.b16 %v429, %v425
    %v462 = vpack.c.b16 %v430, %v426
    %495 = vmatprep.subr.bf16.mxu0 %v460
    %496 = vmatpush1.bf16.msra.mxu0 %v459
    %497 = vmatprep.subr.bf16.mxu0 %v456
    %498 = vmatpush1.bf16.msra.mxu0 %v455
    %499 = vmatprep.subr.bf16.mxu0 %v452
    %500 = vmatpush1.bf16.msra.mxu0 %v451
    %501 = vmatprep.subr.bf16.mxu0 %v448
    %502 = vmatpush1.bf16.msra.mxu0 %v447
    %503 = vmatprep.subr.bf16.mxu0 %v444
    %504 = vmatpush1.bf16.msra.mxu0 %v443
    %505 = vmatprep.subr.bf16.mxu0 %v440
    %506 = vmatpush1.bf16.msra.mxu0 %v439
    %507 = vmatprep.subr.bf16.mxu0 %v436
    %508 = vmatpush1.bf16.msra.mxu0 %v435
    %509 = vmatprep.subr.bf16.mxu0 %v432
    %510 = vmatpush1.bf16.msra.mxu0 %v431
    %511 = vmatprep.subr.bf16.mxu0 0
    %512 = vmatpush2.bf16.msra.mxu0 0
    %513 = vmatprep.subr.bf16.mxu0 0
    %514 = vmatpush2.bf16.msra.mxu0 0
    %515 = vmatprep.subr.bf16.mxu0 0
    %516 = vmatpush2.bf16.msra.mxu0 0
    %517 = vmatprep.subr.bf16.mxu0 0
    %518 = vmatpush2.bf16.msra.mxu0 0
    %519 = vmatprep.subr.bf16.mxu0 0
    %520 = vmatpush2.bf16.msra.mxu0 0
    %521 = vmatprep.subr.bf16.mxu0 0
    %522 = vmatpush2.bf16.msra.mxu0 0
    %523 = vmatprep.subr.bf16.mxu0 0
    %524 = vmatpush2.bf16.msra.mxu0 0
    %525 = vmatprep.subr.bf16.mxu0 0
    %526 = vmatpush2.bf16.msra.mxu0 0
    %527 = vmatprep.mubr.bf16.mxu0 0
    %528 = vmatmul.mubr.bf16.gmra.mxu0 %v327
    %v529 = vpop.f32.mrf.mxu0
    %v530 = vadd.f32 %v294, %v529
    %v531 = vpop.f32.mrf.mxu0
    %v532 = vadd.f32 %v298, %v531
    %v533 = vpop.f32.mrf.mxu0
    %v534 = vadd.f32 %v294, %v533
    %v535 = vpop.f32.mrf.mxu0
    %v536 = vadd.f32 %v298, %v535
    %537 = vmatprep.mubr.bf16.mxu0 0
    %538 = vmatmul.mubr.bf16.gmra.mxu0 %v328
    %v539 = vpop.f32.mrf.mxu0
    %v540 = vadd.f32 %v294, %v539
    %v541 = vpop.f32.mrf.mxu0
    %v542 = vadd.f32 %v298, %v541
    %v543 = vpop.f32.mrf.mxu0
    %v544 = vadd.f32 %v294, %v543
    %v545 = vpop.f32.mrf.mxu0
    %v546 = vadd.f32 %v298, %v545
    %547 = vmatprep.mubr.bf16.mxu0 0
    %548 = vmatmul.mubr.bf16.gmra.mxu0 %v329
    %v549 = vpop.f32.mrf.mxu0
    %v550 = vadd.f32 %v294, %v549
    %v551 = vpop.f32.mrf.mxu0
    %v552 = vadd.f32 %v298, %v551
    %v553 = vpop.f32.mrf.mxu0
    %v554 = vadd.f32 %v294, %v553
    %v555 = vpop.f32.mrf.mxu0
    %v556 = vadd.f32 %v298, %v555
    %557 = vmatprep.mubr.bf16.mxu0 0
    %558 = vmatmul.mubr.bf16.gmra.mxu0 %v330
    %v559 = vpop.f32.mrf.mxu0
    %v560 = vadd.f32 %v294, %v559
    %v561 = vpop.f32.mrf.mxu0
    %v562 = vadd.f32 %v298, %v561
    %v563 = vpop.f32.mrf.mxu0
    %v564 = vadd.f32 %v294, %v563
    %v565 = vpop.f32.mrf.mxu0
    %v566 = vadd.f32 %v298, %v565
    %567 = vdwg.mxu0
    %568 = vmatprep.subr.bf16.mxu0 %v462
    %569 = vmatpush1.bf16.msra.mxu0 %v461
    %570 = vmatprep.subr.bf16.mxu0 %v458
    %571 = vmatpush1.bf16.msra.mxu0 %v457
    %572 = vmatprep.subr.bf16.mxu0 %v454
    %573 = vmatpush1.bf16.msra.mxu0 %v453
    %574 = vmatprep.subr.bf16.mxu0 %v450
    %575 = vmatpush1.bf16.msra.mxu0 %v449
    %576 = vmatprep.subr.bf16.mxu0 %v446
    %577 = vmatpush1.bf16.msra.mxu0 %v445
    %578 = vmatprep.subr.bf16.mxu0 %v442
    %579 = vmatpush1.bf16.msra.mxu0 %v441
    %580 = vmatprep.subr.bf16.mxu0 %v438
    %581 = vmatpush1.bf16.msra.mxu0 %v437
    %582 = vmatprep.subr.bf16.mxu0 %v434
    %583 = vmatpush1.bf16.msra.mxu0 %v433
    %584 = vmatprep.subr.bf16.mxu0 0
    %585 = vmatpush2.bf16.msra.mxu0 0
    %586 = vmatprep.subr.bf16.mxu0 0
    %587 = vmatpush2.bf16.msra.mxu0 0
    %588 = vmatprep.subr.bf16.mxu0 0
    %589 = vmatpush2.bf16.msra.mxu0 0
    %590 = vmatprep.subr.bf16.mxu0 0
    %591 = vmatpush2.bf16.msra.mxu0 0
    %592 = vmatprep.subr.bf16.mxu0 0
    %593 = vmatpush2.bf16.msra.mxu0 0
    %594 = vmatprep.subr.bf16.mxu0 0
    %595 = vmatpush2.bf16.msra.mxu0 0
    %596 = vmatprep.subr.bf16.mxu0 0
    %597 = vmatpush2.bf16.msra.mxu0 0
    %598 = vmatprep.subr.bf16.mxu0 0
    %599 = vmatpush2.bf16.msra.mxu0 0
    %600 = vmatprep.mubr.bf16.mxu0 0
    %601 = vmatmul.mubr.bf16.gmra.mxu0 %v327
    %v602 = vpop.f32.mrf.mxu0
    %v603 = vadd.f32 %v302, %v602
    %v604 = vpop.f32.mrf.mxu0
    %v605 = vadd.f32 %v306, %v604
    %v606 = vpop.f32.mrf.mxu0
    %v607 = vadd.f32 %v302, %v606
    %v608 = vpop.f32.mrf.mxu0
    %v609 = vadd.f32 %v306, %v608
    %610 = vmatprep.mubr.bf16.mxu0 0
    %611 = vmatmul.mubr.bf16.gmra.mxu0 %v328
    %v612 = vpop.f32.mrf.mxu0
    %v613 = vadd.f32 %v302, %v612
    %v614 = vpop.f32.mrf.mxu0
    %v615 = vadd.f32 %v306, %v614
    %v616 = vpop.f32.mrf.mxu0
    %v617 = vadd.f32 %v302, %v616
    %v618 = vpop.f32.mrf.mxu0
    %v619 = vadd.f32 %v306, %v618
    %620 = vmatprep.mubr.bf16.mxu0 0
    %621 = vmatmul.mubr.bf16.gmra.mxu0 %v329
    %v622 = vpop.f32.mrf.mxu0
    %v623 = vadd.f32 %v302, %v622
    %v624 = vpop.f32.mrf.mxu0
    %v625 = vadd.f32 %v306, %v624
    %v626 = vpop.f32.mrf.mxu0
    %v627 = vadd.f32 %v302, %v626
    %v628 = vpop.f32.mrf.mxu0
    %v629 = vadd.f32 %v306, %v628
    %630 = vmatprep.mubr.bf16.mxu0 0
    %631 = vmatmul.mubr.bf16.gmra.mxu0 %v330
    %v632 = vpop.f32.mrf.mxu0
    %v633 = vadd.f32 %v302, %v632
    %v634 = vpop.f32.mrf.mxu0
    %v635 = vadd.f32 %v306, %v634
    %v636 = vpop.f32.mrf.mxu0
    %v637 = vadd.f32 %v302, %v636
    %v638 = vpop.f32.mrf.mxu0
    %v639 = vadd.f32 %v306, %v638
    %640 = vdwg.mxu0
    %641 = vst [vmem:[#allocation4] sm:$0xff] %v530
    %642 = vst [vmem:[#allocation4 + $0x8] sm:$0xff] %v532
    %643 = vst [vmem:[#allocation4 + $0x10] sm:$0xff] %v603
    %644 = vst [vmem:[#allocation4 + $0x18] sm:$0xff] %v605
    %645 = vst [vmem:[#allocation4 + $0x20] sm:$0xff] %v534
    %646 = vst [vmem:[#allocation4 + $0x28] sm:$0xff] %v536
    %647 = vst [vmem:[#allocation4 + $0x30] sm:$0xff] %v607
    %648 = vst [vmem:[#allocation4 + $0x38] sm:$0xff] %v609
    %649 = vst [vmem:[#allocation4 + $0x40] sm:$0xff] %v540
    %650 = vst [vmem:[#allocation4 + $0x48] sm:$0xff] %v542
    %651 = vst [vmem:[#allocation4 + $0x50] sm:$0xff] %v613
    %652 = vst [vmem:[#allocation4 + $0x58] sm:$0xff] %v615
    %653 = vst [vmem:[#allocation4 + $0x60] sm:$0xff] %v544
    %654 = vst [vmem:[#allocation4 + $0x68] sm:$0xff] %v546
    %655 = vst [vmem:[#allocation4 + $0x70] sm:$0xff] %v617
    %656 = vst [vmem:[#allocation4 + $0x78] sm:$0xff] %v619
    %657 = vst [vmem:[#allocation4 + $0x80] sm:$0xff] %v550
    %658 = vst [vmem:[#allocation4 + $0x88] sm:$0xff] %v552
    %659 = vst [vmem:[#allocation4 + $0x90] sm:$0xff] %v623
    %660 = vst [vmem:[#allocation4 + $0x98] sm:$0xff] %v625
    %661 = vst [vmem:[#allocation4 + $0xa0] sm:$0xff] %v554
    %662 = vst [vmem:[#allocation4 + $0xa8] sm:$0xff] %v556
    %663 = vst [vmem:[#allocation4 + $0xb0] sm:$0xff] %v627
    %664 = vst [vmem:[#allocation4 + $0xb8] sm:$0xff] %v629
    %665 = vst [vmem:[#allocation4 + $0xc0] sm:$0xff] %v560
    %666 = vst [vmem:[#allocation4 + $0xc8] sm:$0xff] %v562
    %667 = vst [vmem:[#allocation4 + $0xd0] sm:$0xff] %v633
    %668 = vst [vmem:[#allocation4 + $0xd8] sm:$0xff] %v635
    %669 = vst [vmem:[#allocation4 + $0xe0] sm:$0xff] %v564
    %670 = vst [vmem:[#allocation4 + $0xe8] sm:$0xff] %v566
    %671 = vst [vmem:[#allocation4 + $0xf0] sm:$0xff] %v637
    %672 = vst [vmem:[#allocation4 + $0xf8] sm:$0xff] %v639
    %v673 = vld [vmem:[#allocation3] sm:$0xff]
    %v674 = vld [vmem:[#allocation3 + $0x8] sm:$0xff]
    %v675 = vld [vmem:[#allocation3 + $0x10] sm:$0xff]
    %v676 = vld [vmem:[#allocation3 + $0x18] sm:$0xff]
    %v677 = vld [vmem:[#allocation3 + $0x20] sm:$0xff]
    %v678 = vld [vmem:[#allocation3 + $0x28] sm:$0xff]
    %v679 = vld [vmem:[#allocation3 + $0x30] sm:$0xff]
    %v680 = vld [vmem:[#allocation3 + $0x38] sm:$0xff]
    %v681 = vld [vmem:[#allocation3 + $0x40] sm:$0xff]
    %v682 = vld [vmem:[#allocation3 + $0x48] sm:$0xff]
    %v683 = vld [vmem:[#allocation3 + $0x50] sm:$0xff]
    %v684 = vld [vmem:[#allocation3 + $0x58] sm:$0xff]
    %v685 = vld [vmem:[#allocation3 + $0x60] sm:$0xff]
    %v686 = vld [vmem:[#allocation3 + $0x68] sm:$0xff]
    %v687 = vld [vmem:[#allocation3 + $0x70] sm:$0xff]
    %v688 = vld [vmem:[#allocation3 + $0x78] sm:$0xff]
    %v689 = vld [vmem:[#allocation3 + $0x80] sm:$0xff]
    %v690 = vld [vmem:[#allocation3 + $0x88] sm:$0xff]
    %v691 = vld [vmem:[#allocation3 + $0x90] sm:$0xff]
    %v692 = vld [vmem:[#allocation3 + $0x98] sm:$0xff]
    %v693 = vld [vmem:[#allocation3 + $0xa0] sm:$0xff]
    %v694 = vld [vmem:[#allocation3 + $0xa8] sm:$0xff]
    %v695 = vld [vmem:[#allocation3 + $0xb0] sm:$0xff]
    %v696 = vld [vmem:[#allocation3 + $0xb8] sm:$0xff]
    %v697 = vld [vmem:[#allocation3 + $0xc0] sm:$0xff]
    %v698 = vld [vmem:[#allocation3 + $0xc8] sm:$0xff]
    %v699 = vld [vmem:[#allocation3 + $0xd0] sm:$0xff]
    %v700 = vld [vmem:[#allocation3 + $0xd8] sm:$0xff]
    %v701 = vld [vmem:[#allocation3 + $0xe0] sm:$0xff]
    %v702 = vld [vmem:[#allocation3 + $0xe8] sm:$0xff]
    %v703 = vld [vmem:[#allocation3 + $0xf0] sm:$0xff]
    %v704 = vld [vmem:[#allocation3 + $0xf8] sm:$0xff]
    %v705 = vld [vmem:[#allocation6] sm:$0xf]
    %v706 = vld [vmem:[#allocation7] sm:$0xff]
    %s707 = smul.u32 0, 4
    %s708 = smul.addr %s707, 8
    %s709 = scalar_lea.vmem [#allocation4], %s708
    %v710 = vld [vmem:[%s709] sm:$0xff]
    %v711 = vld [vmem:[%s709 + $0x8] sm:$0xff]
    %v712 = vld [vmem:[%s709 + $0x10] sm:$0xff]
    %v713 = vld [vmem:[%s709 + $0x18] sm:$0xff]
    %v746 = vunpack.c.l.b16 %v673
    %v747 = vunpack.c.h.b16 %v673
    %v748 = vunpack.c.l.b16 %v674
    %v749 = vunpack.c.h.b16 %v674
    %v750 = vunpack.c.l.b16 %v675
    %v751 = vunpack.c.h.b16 %v675
    %v752 = vunpack.c.l.b16 %v676
    %v753 = vunpack.c.h.b16 %v676
    %v754 = vunpack.c.l.b16 %v677
    %v755 = vunpack.c.h.b16 %v677
    %v756 = vunpack.c.l.b16 %v678
    %v757 = vunpack.c.h.b16 %v678
    %v758 = vunpack.c.l.b16 %v679
    %v759 = vunpack.c.h.b16 %v679
    %v760 = vunpack.c.l.b16 %v680
    %v761 = vunpack.c.h.b16 %v680
    %v762 = vunpack.c.l.b16 %v681
    %v763 = vunpack.c.h.b16 %v681
    %v764 = vunpack.c.l.b16 %v682
    %v765 = vunpack.c.h.b16 %v682
    %v766 = vunpack.c.l.b16 %v683
    %v767 = vunpack.c.h.b16 %v683
    %v768 = vunpack.c.l.b16 %v684
    %v769 = vunpack.c.h.b16 %v684
    %v770 = vunpack.c.l.b16 %v685
    %v771 = vunpack.c.h.b16 %v685
    %v772 = vunpack.c.l.b16 %v686
    %v773 = vunpack.c.h.b16 %v686
    %v774 = vunpack.c.l.b16 %v687
    %v775 = vunpack.c.h.b16 %v687
    %v776 = vunpack.c.l.b16 %v688
    %v777 = vunpack.c.h.b16 %v688
    %v778 = vunpack.c.l.b16 %v689
    %v779 = vunpack.c.h.b16 %v689
    %v780 = vunpack.c.l.b16 %v690
    %v781 = vunpack.c.h.b16 %v690
    %v782 = vunpack.c.l.b16 %v691
    %v783 = vunpack.c.h.b16 %v691
    %v784 = vunpack.c.l.b16 %v692
    %v785 = vunpack.c.h.b16 %v692
    %v786 = vunpack.c.l.b16 %v693
    %v787 = vunpack.c.h.b16 %v693
    %v788 = vunpack.c.l.b16 %v694
    %v789 = vunpack.c.h.b16 %v694
    %v790 = vunpack.c.l.b16 %v695
    %v791 = vunpack.c.h.b16 %v695
    %v792 = vunpack.c.l.b16 %v696
    %v793 = vunpack.c.h.b16 %v696
    %v794 = vunpack.c.l.b16 %v697
    %v795 = vunpack.c.h.b16 %v697
    %v796 = vunpack.c.l.b16 %v698
    %v797 = vunpack.c.h.b16 %v698
    %v798 = vunpack.c.l.b16 %v699
    %v799 = vunpack.c.h.b16 %v699
    %v800 = vunpack.c.l.b16 %v700
    %v801 = vunpack.c.h.b16 %v700
    %v802 = vunpack.c.l.b16 %v701
    %v803 = vunpack.c.h.b16 %v701
    %v804 = vunpack.c.l.b16 %v702
    %v805 = vunpack.c.h.b16 %v702
    %v806 = vunpack.c.l.b16 %v703
    %v807 = vunpack.c.h.b16 %v703
    %v808 = vunpack.c.l.b16 %v704
    %v809 = vunpack.c.h.b16 %v704
    %v810 = vpack.c.b16 %v750, %v746
    %v811 = vpack.c.b16 %v751, %v747
    %v812 = vpack.c.b16 %v752, %v748
    %v813 = vpack.c.b16 %v753, %v749
    %v814 = vpack.c.b16 %v758, %v754
    %v815 = vpack.c.b16 %v759, %v755
    %v816 = vpack.c.b16 %v760, %v756
    %v817 = vpack.c.b16 %v761, %v757
    %v818 = vpack.c.b16 %v766, %v762
    %v819 = vpack.c.b16 %v767, %v763
    %v820 = vpack.c.b16 %v768, %v764
    %v821 = vpack.c.b16 %v769, %v765
    %v822 = vpack.c.b16 %v774, %v770
    %v823 = vpack.c.b16 %v775, %v771
    %v824 = vpack.c.b16 %v776, %v772
    %v825 = vpack.c.b16 %v777, %v773
    %v826 = vpack.c.b16 %v782, %v778
    %v827 = vpack.c.b16 %v783, %v779
    %v828 = vpack.c.b16 %v784, %v780
    %v829 = vpack.c.b16 %v785, %v781
    %v830 = vpack.c.b16 %v790, %v786
    %v831 = vpack.c.b16 %v791, %v787
    %v832 = vpack.c.b16 %v792, %v788
    %v833 = vpack.c.b16 %v793, %v789
    %v834 = vpack.c.b16 %v798, %v794
    %v835 = vpack.c.b16 %v799, %v795
    %v836 = vpack.c.b16 %v800, %v796
    %v837 = vpack.c.b16 %v801, %v797
    %v838 = vpack.c.b16 %v806, %v802
    %v839 = vpack.c.b16 %v807, %v803
    %v840 = vpack.c.b16 %v808, %v804
    %v841 = vpack.c.b16 %v809, %v805
    %874 = vmatprep.subr.bf16.mxu0 %v839
    %875 = vmatpush1.bf16.msra.mxu0 %v838
    %876 = vmatprep.subr.bf16.mxu0 %v835
    %877 = vmatpush1.bf16.msra.mxu0 %v834
    %878 = vmatprep.subr.bf16.mxu0 %v831
    %879 = vmatpush1.bf16.msra.mxu0 %v830
    %880 = vmatprep.subr.bf16.mxu0 %v827
    %881 = vmatpush1.bf16.msra.mxu0 %v826
    %882 = vmatprep.subr.bf16.mxu0 %v823
    %883 = vmatpush1.bf16.msra.mxu0 %v822
    %884 = vmatprep.subr.bf16.mxu0 %v819
    %885 = vmatpush1.bf16.msra.mxu0 %v818
    %886 = vmatprep.subr.bf16.mxu0 %v815
    %887 = vmatpush1.bf16.msra.mxu0 %v814
    %888 = vmatprep.subr.bf16.mxu0 %v811
    %889 = vmatpush1.bf16.msra.mxu0 %v810
    %890 = vmatprep.subr.bf16.mxu0 0
    %891 = vmatpush2.bf16.msra.mxu0 0
    %892 = vmatprep.subr.bf16.mxu0 0
    %893 = vmatpush2.bf16.msra.mxu0 0
    %894 = vmatprep.subr.bf16.mxu0 0
    %895 = vmatpush2.bf16.msra.mxu0 0
    %896 = vmatprep.subr.bf16.mxu0 0
    %897 = vmatpush2.bf16.msra.mxu0 0
    %898 = vmatprep.subr.bf16.mxu0 0
    %899 = vmatpush2.bf16.msra.mxu0 0
    %900 = vmatprep.subr.bf16.mxu0 0
    %901 = vmatpush2.bf16.msra.mxu0 0
    %902 = vmatprep.subr.bf16.mxu0 0
    %903 = vmatpush2.bf16.msra.mxu0 0
    %904 = vmatprep.subr.bf16.mxu0 0
    %905 = vmatpush2.bf16.msra.mxu0 0
    %906 = vmatprep.mubr.bf16.mxu0 0
    %907 = vmatmul.mubr.bf16.gmra.mxu0 %v705
    %v908 = vpop.f32.mrf.mxu0
    %v909 = vadd.f32 0.0, %v908
    %v910 = vpop.f32.mrf.mxu0
    %v911 = vadd.f32 0.0, %v910
    %v912 = vpop.f32.mrf.mxu0
    %v913 = vpop.f32.mrf.mxu0
    %914 = vdwg.mxu0
    %915 = vmatprep.subr.bf16.mxu0 %v841
    %916 = vmatpush1.bf16.msra.mxu0 %v840
    %917 = vmatprep.subr.bf16.mxu0 %v837
    %918 = vmatpush1.bf16.msra.mxu0 %v836
    %919 = vmatprep.subr.bf16.mxu0 %v833
    %920 = vmatpush1.bf16.msra.mxu0 %v832
    %921 = vmatprep.subr.bf16.mxu0 %v829
    %922 = vmatpush1.bf16.msra.mxu0 %v828
    %923 = vmatprep.subr.bf16.mxu0 %v825
    %924 = vmatpush1.bf16.msra.mxu0 %v824
    %925 = vmatprep.subr.bf16.mxu0 %v821
    %926 = vmatpush1.bf16.msra.mxu0 %v820
    %927 = vmatprep.subr.bf16.mxu0 %v817
    %928 = vmatpush1.bf16.msra.mxu0 %v816
    %929 = vmatprep.subr.bf16.mxu0 %v813
    %930 = vmatpush1.bf16.msra.mxu0 %v812
    %931 = vmatprep.subr.bf16.mxu0 0
    %932 = vmatpush2.bf16.msra.mxu0 0
    %933 = vmatprep.subr.bf16.mxu0 0
    %934 = vmatpush2.bf16.msra.mxu0 0
    %935 = vmatprep.subr.bf16.mxu0 0
    %936 = vmatpush2.bf16.msra.mxu0 0
    %937 = vmatprep.subr.bf16.mxu0 0
    %938 = vmatpush2.bf16.msra.mxu0 0
    %939 = vmatprep.subr.bf16.mxu0 0
    %940 = vmatpush2.bf16.msra.mxu0 0
    %941 = vmatprep.subr.bf16.mxu0 0
    %942 = vmatpush2.bf16.msra.mxu0 0
    %943 = vmatprep.subr.bf16.mxu0 0
    %944 = vmatpush2.bf16.msra.mxu0 0
    %945 = vmatprep.subr.bf16.mxu0 0
    %946 = vmatpush2.bf16.msra.mxu0 0
    %947 = vmatprep.mubr.bf16.mxu0 0
    %948 = vmatmul.mubr.bf16.gmra.mxu0 %v705
    %v949 = vpop.f32.mrf.mxu0
    %v950 = vadd.f32 0.0, %v949
    %v951 = vpop.f32.mrf.mxu0
    %v952 = vadd.f32 0.0, %v951
    %v953 = vpop.f32.mrf.mxu0
    %v954 = vpop.f32.mrf.mxu0
    %955 = vdwg.mxu0
    %v956 = vadd.f32 %v710, %v909
    %v957 = vadd.f32 %v711, %v911
    %v958 = vadd.f32 %v712, %v950
    %v959 = vadd.f32 %v713, %v952
    %v960 = vxor.u32 %v956, 2147483648
    %v961 = vxor.u32 %v957, 2147483648
    %v962 = vmul.f32 %v960, 1.442695
    %v963 = vpow.pop %v962
    %v964 = vmul.f32 %v961, 1.442695
    %v965 = vpow.pop %v964
    %v966 = vadd.f32 %v963, 1.0
    %v967 = vadd.f32 %v965, 1.0
    %v968 = vrcp.pop %v966
    %v969 = vmul.f32 1.0, %v968
    %v970 = vrcp.pop %v967
    %v971 = vmul.f32 1.0, %v970
    %v972 = vxor.u32 %v959, 2147483648
    %v973 = vmul.f32 %v972, 1.442695
    %v974 = vpow.pop %v973
    %v975 = vadd.f32 %v974, 1.0
    %v976 = vrcp.pop %v975
    %v977 = vmul.f32 1.0, %v976
    %v978 = vtanh.pop %v958
    %v979 = vmul.f32 %v971, %v706
    %v980 = vmul.f32 %v969, %v978
    %v981 = vadd.f32 %v979, %v980
    %v982 = vtanh.pop %v981
    %v983 = vmul.f32 %v977, %v982
    %v984 = vpack.c.bf16 %v983, %v983
    %985 = vst [vmem:[#allocation5] sm:$0xf] %v984
    %s986 = smul.u32 1, 4
    %s987 = smul.addr %s986, 8
    %s988 = scalar_lea.vmem [#allocation4], %s987
    %v989 = vld [vmem:[%s988] sm:$0xff]
    %v990 = vld [vmem:[%s988 + $0x8] sm:$0xff]
    %v991 = vld [vmem:[%s988 + $0x10] sm:$0xff]
    %v992 = vld [vmem:[%s988 + $0x18] sm:$0xff]
    %993 = vmatprep.subr.bf16.mxu0 %v839
    %994 = vmatpush1.bf16.msra.mxu0 %v838
    %995 = vmatprep.subr.bf16.mxu0 %v835
    %996 = vmatpush1.bf16.msra.mxu0 %v834
    %997 = vmatprep.subr.bf16.mxu0 %v831
    %998 = vmatpush1.bf16.msra.mxu0 %v830
    %999 = vmatprep.subr.bf16.mxu0 %v827
    %1000 = vmatpush1.bf16.msra.mxu0 %v826
    %1001 = vmatprep.subr.bf16.mxu0 %v823
    %1002 = vmatpush1.bf16.msra.mxu0 %v822
    %1003 = vmatprep.subr.bf16.mxu0 %v819
    %1004 = vmatpush1.bf16.msra.mxu0 %v818
    %1005 = vmatprep.subr.bf16.mxu0 %v815
    %1006 = vmatpush1.bf16.msra.mxu0 %v814
    %1007 = vmatprep.subr.bf16.mxu0 %v811
    %1008 = vmatpush1.bf16.msra.mxu0 %v810
    %1009 = vmatprep.subr.bf16.mxu0 0
    %1010 = vmatpush2.bf16.msra.mxu0 0
    %1011 = vmatprep.subr.bf16.mxu0 0
    %1012 = vmatpush2.bf16.msra.mxu0 0
    %1013 = vmatprep.subr.bf16.mxu0 0
    %1014 = vmatpush2.bf16.msra.mxu0 0
    %1015 = vmatprep.subr.bf16.mxu0 0
    %1016 = vmatpush2.bf16.msra.mxu0 0
    %1017 = vmatprep.subr.bf16.mxu0 0
    %1018 = vmatpush2.bf16.msra.mxu0 0
    %1019 = vmatprep.subr.bf16.mxu0 0
    %1020 = vmatpush2.bf16.msra.mxu0 0
    %1021 = vmatprep.subr.bf16.mxu0 0
    %1022 = vmatpush2.bf16.msra.mxu0 0
    %1023 = vmatprep.subr.bf16.mxu0 0
    %1024 = vmatpush2.bf16.msra.mxu0 0
    %1025 = vmatprep.mubr.bf16.mxu0 0
    %1026 = vmatmul.mubr.bf16.gmra.mxu0 %v984
    %v1027 = vpop.f32.mrf.mxu0
    %v1028 = vadd.f32 0.0, %v1027
    %v1029 = vpop.f32.mrf.mxu0
    %v1030 = vadd.f32 0.0, %v1029
    %v1031 = vpop.f32.mrf.mxu0
    %v1032 = vpop.f32.mrf.mxu0
    %1033 = vdwg.mxu0
    %1034 = vmatprep.subr.bf16.mxu0 %v841
    %1035 = vmatpush1.bf16.msra.mxu0 %v840
    %1036 = vmatprep.subr.bf16.mxu0 %v837
    %1037 = vmatpush1.bf16.msra.mxu0 %v836
    %1038 = vmatprep.subr.bf16.mxu0 %v833
    %1039 = vmatpush1.bf16.msra.mxu0 %v832
    %1040 = vmatprep.subr.bf16.mxu0 %v829
    %1041 = vmatpush1.bf16.msra.mxu0 %v828
    %1042 = vmatprep.subr.bf16.mxu0 %v825
    %1043 = vmatpush1.bf16.msra.mxu0 %v824
    %1044 = vmatprep.subr.bf16.mxu0 %v821
    %1045 = vmatpush1.bf16.msra.mxu0 %v820
    %1046 = vmatprep.subr.bf16.mxu0 %v817
    %1047 = vmatpush1.bf16.msra.mxu0 %v816
    %1048 = vmatprep.subr.bf16.mxu0 %v813
    %1049 = vmatpush1.bf16.msra.mxu0 %v812
    %1050 = vmatprep.subr.bf16.mxu0 0
    %1051 = vmatpush2.bf16.msra.mxu0 0
    %1052 = vmatprep.subr.bf16.mxu0 0
    %1053 = vmatpush2.bf16.msra.mxu0 0
    %1054 = vmatprep.subr.bf16.mxu0 0
    %1055 = vmatpush2.bf16.msra.mxu0 0
    %1056 = vmatprep.subr.bf16.mxu0 0
    %1057 = vmatpush2.bf16.msra.mxu0 0
    %1058 = vmatprep.subr.bf16.mxu0 0
    %1059 = vmatpush2.bf16.msra.mxu0 0
    %1060 = vmatprep.subr.bf16.mxu0 0
    %1061 = vmatpush2.bf16.msra.mxu0 0
    %1062 = vmatprep.subr.bf16.mxu0 0
    %1063 = vmatpush2.bf16.msra.mxu0 0
    %1064 = vmatprep.subr.bf16.mxu0 0
    %1065 = vmatpush2.bf16.msra.mxu0 0
    %1066 = vmatprep.mubr.bf16.mxu0 0
    %1067 = vmatmul.mubr.bf16.gmra.mxu0 %v984
    %v1068 = vpop.f32.mrf.mxu0
    %v1069 = vadd.f32 0.0, %v1068
    %v1070 = vpop.f32.mrf.mxu0
    %v1071 = vadd.f32 0.0, %v1070
    %v1072 = vpop.f32.mrf.mxu0
    %v1073 = vpop.f32.mrf.mxu0
    %1074 = vdwg.mxu0
    %v1075 = vadd.f32 %v989, %v1028
    %v1076 = vadd.f32 %v990, %v1030
    %v1077 = vadd.f32 %v991, %v1069
    %v1078 = vadd.f32 %v992, %v1071
    %v1079 = vxor.u32 %v1075, 2147483648
    %v1080 = vxor.u32 %v1076, 2147483648
    %v1081 = vmul.f32 %v1079, 1.442695
    %v1082 = vpow.pop %v1081
    %v1083 = vmul.f32 %v1080, 1.442695
    %v1084 = vpow.pop %v1083
    %v1085 = vadd.f32 %v1082, 1.0
    %v1086 = vadd.f32 %v1084, 1.0
    %v1087 = vrcp.pop %v1085
    %v1088 = vmul.f32 1.0, %v1087
    %v1089 = vrcp.pop %v1086
    %v1090 = vmul.f32 1.0, %v1089
    %v1091 = vxor.u32 %v1078, 2147483648
    %v1092 = vmul.f32 %v1091, 1.442695
    %v1093 = vpow.pop %v1092
    %v1094 = vadd.f32 %v1093, 1.0
    %v1095 = vrcp.pop %v1094
    %v1096 = vmul.f32 1.0, %v1095
    %v1097 = vtanh.pop %v1077
    %v1098 = vmul.f32 %v1090, %v981
    %v1099 = vmul.f32 %v1088, %v1097
    %v1100 = vadd.f32 %v1098, %v1099
    %v1101 = vtanh.pop %v1100
    %v1102 = vmul.f32 %v1096, %v1101
    %v1103 = vpack.c.bf16 %v1102, %v1102
    %s1104 = scalar_lea.vmem [#allocation5], 4
    %1105 = vst [vmem:[%s1104] sm:$0xf] %v1103
    %s1106 = smul.u32 2, 4
    %s1107 = smul.addr %s1106, 8
    %s1108 = scalar_lea.vmem [#allocation4], %s1107
    %v1109 = vld [vmem:[%s1108] sm:$0xff]
    %v1110 = vld [vmem:[%s1108 + $0x8] sm:$0xff]
    %v1111 = vld [vmem:[%s1108 + $0x10] sm:$0xff]
    %v1112 = vld [vmem:[%s1108 + $0x18] sm:$0xff]
    %1113 = vmatprep.subr.bf16.mxu0 %v839
    %1114 = vmatpush1.bf16.msra.mxu0 %v838
    %1115 = vmatprep.subr.bf16.mxu0 %v835
    %1116 = vmatpush1.bf16.msra.mxu0 %v834
    %1117 = vmatprep.subr.bf16.mxu0 %v831
    %1118 = vmatpush1.bf16.msra.mxu0 %v830
    %1119 = vmatprep.subr.bf16.mxu0 %v827
    %1120 = vmatpush1.bf16.msra.mxu0 %v826
    %1121 = vmatprep.subr.bf16.mxu0 %v823
    %1122 = vmatpush1.bf16.msra.mxu0 %v822
    %1123 = vmatprep.subr.bf16.mxu0 %v819
    %1124 = vmatpush1.bf16.msra.mxu0 %v818
    %1125 = vmatprep.subr.bf16.mxu0 %v815
    %1126 = vmatpush1.bf16.msra.mxu0 %v814
    %1127 = vmatprep.subr.bf16.mxu0 %v811
    %1128 = vmatpush1.bf16.msra.mxu0 %v810
    %1129 = vmatprep.subr.bf16.mxu0 0
    %1130 = vmatpush2.bf16.msra.mxu0 0
    %1131 = vmatprep.subr.bf16.mxu0 0
    %1132 = vmatpush2.bf16.msra.mxu0 0
    %1133 = vmatprep.subr.bf16.mxu0 0
    %1134 = vmatpush2.bf16.msra.mxu0 0
    %1135 = vmatprep.subr.bf16.mxu0 0
    %1136 = vmatpush2.bf16.msra.mxu0 0
    %1137 = vmatprep.subr.bf16.mxu0 0
    %1138 = vmatpush2.bf16.msra.mxu0 0
    %1139 = vmatprep.subr.bf16.mxu0 0
    %1140 = vmatpush2.bf16.msra.mxu0 0
    %1141 = vmatprep.subr.bf16.mxu0 0
    %1142 = vmatpush2.bf16.msra.mxu0 0
    %1143 = vmatprep.subr.bf16.mxu0 0
    %1144 = vmatpush2.bf16.msra.mxu0 0
    %1145 = vmatprep.mubr.bf16.mxu0 0
    %1146 = vmatmul.mubr.bf16.gmra.mxu0 %v1103
    %v1147 = vpop.f32.mrf.mxu0
    %v1148 = vadd.f32 0.0, %v1147
    %v1149 = vpop.f32.mrf.mxu0
    %v1150 = vadd.f32 0.0, %v1149
    %v1151 = vpop.f32.mrf.mxu0
    %v1152 = vpop.f32.mrf.mxu0
    %1153 = vdwg.mxu0
    %1154 = vmatprep.subr.bf16.mxu0 %v841
    %1155 = vmatpush1.bf16.msra.mxu0 %v840
    %1156 = vmatprep.subr.bf16.mxu0 %v837
    %1157 = vmatpush1.bf16.msra.mxu0 %v836
    %1158 = vmatprep.subr.bf16.mxu0 %v833
    %1159 = vmatpush1.bf16.msra.mxu0 %v832
    %1160 = vmatprep.subr.bf16.mxu0 %v829
    %1161 = vmatpush1.bf16.msra.mxu0 %v828
    %1162 = vmatprep.subr.bf16.mxu0 %v825
    %1163 = vmatpush1.bf16.msra.mxu0 %v824
    %1164 = vmatprep.subr.bf16.mxu0 %v821
    %1165 = vmatpush1.bf16.msra.mxu0 %v820
    %1166 = vmatprep.subr.bf16.mxu0 %v817
    %1167 = vmatpush1.bf16.msra.mxu0 %v816
    %1168 = vmatprep.subr.bf16.mxu0 %v813
    %1169 = vmatpush1.bf16.msra.mxu0 %v812
    %1170 = vmatprep.subr.bf16.mxu0 0
    %1171 = vmatpush2.bf16.msra.mxu0 0
    %1172 = vmatprep.subr.bf16.mxu0 0
    %1173 = vmatpush2.bf16.msra.mxu0 0
    %1174 = vmatprep.subr.bf16.mxu0 0
    %1175 = vmatpush2.bf16.msra.mxu0 0
    %1176 = vmatprep.subr.bf16.mxu0 0
    %1177 = vmatpush2.bf16.msra.mxu0 0
    %1178 = vmatprep.subr.bf16.mxu0 0
    %1179 = vmatpush2.bf16.msra.mxu0 0
    %1180 = vmatprep.subr.bf16.mxu0 0
    %1181 = vmatpush2.bf16.msra.mxu0 0
    %1182 = vmatprep.subr.bf16.mxu0 0
    %1183 = vmatpush2.bf16.msra.mxu0 0
    %1184 = vmatprep.subr.bf16.mxu0 0
    %1185 = vmatpush2.bf16.msra.mxu0 0
    %1186 = vmatprep.mubr.bf16.mxu0 0
    %1187 = vmatmul.mubr.bf16.gmra.mxu0 %v1103
    %v1188 = vpop.f32.mrf.mxu0
    %v1189 = vadd.f32 0.0, %v1188
    %v1190 = vpop.f32.mrf.mxu0
    %v1191 = vadd.f32 0.0, %v1190
    %v1192 = vpop.f32.mrf.mxu0
    %v1193 = vpop.f32.mrf.mxu0
    %1194 = vdwg.mxu0
    %v1195 = vadd.f32 %v1109, %v1148
    %v1196 = vadd.f32 %v1110, %v1150
    %v1197 = vadd.f32 %v1111, %v1189
    %v1198 = vadd.f32 %v1112, %v1191
    %v1199 = vxor.u32 %v1195, 2147483648
    %v1200 = vxor.u32 %v1196, 2147483648
    %v1201 = vmul.f32 %v1199, 1.442695
    %v1202 = vpow.pop %v1201
    %v1203 = vmul.f32 %v1200, 1.442695
    %v1204 = vpow.pop %v1203
    %v1205 = vadd.f32 %v1202, 1.0
    %v1206 = vadd.f32 %v1204, 1.0
    %v1207 = vrcp.pop %v1205
    %v1208 = vmul.f32 1.0, %v1207
    %v1209 = vrcp.pop %v1206
    %v1210 = vmul.f32 1.0, %v1209
    %v1211 = vxor.u32 %v1198, 2147483648
    %v1212 = vmul.f32 %v1211, 1.442695
    %v1213 = vpow.pop %v1212
    %v1214 = vadd.f32 %v1213, 1.0
    %v1215 = vrcp.pop %v1214
    %v1216 = vmul.f32 1.0, %v1215
    %v1217 = vtanh.pop %v1197
    %v1218 = vmul.f32 %v1210, %v1100
    %v1219 = vmul.f32 %v1208, %v1217
    %v1220 = vadd.f32 %v1218, %v1219
    %v1221 = vtanh.pop %v1220
    %v1222 = vmul.f32 %v1216, %v1221
    %v1223 = vpack.c.bf16 %v1222, %v1222
    %s1224 = scalar_lea.vmem [#allocation5], 8
    %1225 = vst [vmem:[%s1224] sm:$0xf] %v1223
    %s1226 = smul.u32 3, 4
    %s1227 = smul.addr %s1226, 8
    %s1228 = scalar_lea.vmem [#allocation4], %s1227
    %v1229 = vld [vmem:[%s1228] sm:$0xff]
    %v1230 = vld [vmem:[%s1228 + $0x8] sm:$0xff]
    %v1231 = vld [vmem:[%s1228 + $0x10] sm:$0xff]
    %v1232 = vld [vmem:[%s1228 + $0x18] sm:$0xff]
    %1233 = vmatprep.subr.bf16.mxu0 %v839
    %1234 = vmatpush1.bf16.msra.mxu0 %v838
    %1235 = vmatprep.subr.bf16.mxu0 %v835
    %1236 = vmatpush1.bf16.msra.mxu0 %v834
    %1237 = vmatprep.subr.bf16.mxu0 %v831
    %1238 = vmatpush1.bf16.msra.mxu0 %v830
    %1239 = vmatprep.subr.bf16.mxu0 %v827
    %1240 = vmatpush1.bf16.msra.mxu0 %v826
    %1241 = vmatprep.subr.bf16.mxu0 %v823
    %1242 = vmatpush1.bf16.msra.mxu0 %v822
    %1243 = vmatprep.subr.bf16.mxu0 %v819
    %1244 = vmatpush1.bf16.msra.mxu0 %v818
    %1245 = vmatprep.subr.bf16.mxu0 %v815
    %1246 = vmatpush1.bf16.msra.mxu0 %v814
    %1247 = vmatprep.subr.bf16.mxu0 %v811
    %1248 = vmatpush1.bf16.msra.mxu0 %v810
    %1249 = vmatprep.subr.bf16.mxu0 0
    %1250 = vmatpush2.bf16.msra.mxu0 0
    %1251 = vmatprep.subr.bf16.mxu0 0
    %1252 = vmatpush2.bf16.msra.mxu0 0
    %1253 = vmatprep.subr.bf16.mxu0 0
    %1254 = vmatpush2.bf16.msra.mxu0 0
    %1255 = vmatprep.subr.bf16.mxu0 0
    %1256 = vmatpush2.bf16.msra.mxu0 0
    %1257 = vmatprep.subr.bf16.mxu0 0
    %1258 = vmatpush2.bf16.msra.mxu0 0
    %1259 = vmatprep.subr.bf16.mxu0 0
    %1260 = vmatpush2.bf16.msra.mxu0 0
    %1261 = vmatprep.subr.bf16.mxu0 0
    %1262 = vmatpush2.bf16.msra.mxu0 0
    %1263 = vmatprep.subr.bf16.mxu0 0
    %1264 = vmatpush2.bf16.msra.mxu0 0
    %1265 = vmatprep.mubr.bf16.mxu0 0
    %1266 = vmatmul.mubr.bf16.gmra.mxu0 %v1223
    %v1267 = vpop.f32.mrf.mxu0
    %v1268 = vadd.f32 0.0, %v1267
    %v1269 = vpop.f32.mrf.mxu0
    %v1270 = vadd.f32 0.0, %v1269
    %v1271 = vpop.f32.mrf.mxu0
    %v1272 = vpop.f32.mrf.mxu0
    %1273 = vdwg.mxu0
    %1274 = vmatprep.subr.bf16.mxu0 %v841
    %1275 = vmatpush1.bf16.msra.mxu0 %v840
    %1276 = vmatprep.subr.bf16.mxu0 %v837
    %1277 = vmatpush1.bf16.msra.mxu0 %v836
    %1278 = vmatprep.subr.bf16.mxu0 %v833
    %1279 = vmatpush1.bf16.msra.mxu0 %v832
    %1280 = vmatprep.subr.bf16.mxu0 %v829
    %1281 = vmatpush1.bf16.msra.mxu0 %v828
    %1282 = vmatprep.subr.bf16.mxu0 %v825
    %1283 = vmatpush1.bf16.msra.mxu0 %v824
    %1284 = vmatprep.subr.bf16.mxu0 %v821
    %1285 = vmatpush1.bf16.msra.mxu0 %v820
    %1286 = vmatprep.subr.bf16.mxu0 %v817
    %1287 = vmatpush1.bf16.msra.mxu0 %v816
    %1288 = vmatprep.subr.bf16.mxu0 %v813
    %1289 = vmatpush1.bf16.msra.mxu0 %v812
    %1290 = vmatprep.subr.bf16.mxu0 0
    %1291 = vmatpush2.bf16.msra.mxu0 0
    %1292 = vmatprep.subr.bf16.mxu0 0
    %1293 = vmatpush2.bf16.msra.mxu0 0
    %1294 = vmatprep.subr.bf16.mxu0 0
    %1295 = vmatpush2.bf16.msra.mxu0 0
    %1296 = vmatprep.subr.bf16.mxu0 0
    %1297 = vmatpush2.bf16.msra.mxu0 0
    %1298 = vmatprep.subr.bf16.mxu0 0
    %1299 = vmatpush2.bf16.msra.mxu0 0
    %1300 = vmatprep.subr.bf16.mxu0 0
    %1301 = vmatpush2.bf16.msra.mxu0 0
    %1302 = vmatprep.subr.bf16.mxu0 0
    %1303 = vmatpush2.bf16.msra.mxu0 0
    %1304 = vmatprep.subr.bf16.mxu0 0
    %1305 = vmatpush2.bf16.msra.mxu0 0
    %1306 = vmatprep.mubr.bf16.mxu0 0
    %1307 = vmatmul.mubr.bf16.gmra.mxu0 %v1223
    %v1308 = vpop.f32.mrf.mxu0
    %v1309 = vadd.f32 0.0, %v1308
    %v1310 = vpop.f32.mrf.mxu0
    %v1311 = vadd.f32 0.0, %v1310
    %v1312 = vpop.f32.mrf.mxu0
    %v1313 = vpop.f32.mrf.mxu0
    %1314 = vdwg.mxu0
    %v1315 = vadd.f32 %v1229, %v1268
    %v1316 = vadd.f32 %v1230, %v1270
    %v1317 = vadd.f32 %v1231, %v1309
    %v1318 = vadd.f32 %v1232, %v1311
    %v1319 = vxor.u32 %v1315, 2147483648
    %v1320 = vxor.u32 %v1316, 2147483648
    %v1321 = vmul.f32 %v1319, 1.442695
    %v1322 = vpow.pop %v1321
    %v1323 = vmul.f32 %v1320, 1.442695
    %v1324 = vpow.pop %v1323
    %v1325 = vadd.f32 %v1322, 1.0
    %v1326 = vadd.f32 %v1324, 1.0
    %v1327 = vrcp.pop %v1325
    %v1328 = vmul.f32 1.0, %v1327
    %v1329 = vrcp.pop %v1326
    %v1330 = vmul.f32 1.0, %v1329
    %v1331 = vxor.u32 %v1318, 2147483648
    %v1332 = vmul.f32 %v1331, 1.442695
    %v1333 = vpow.pop %v1332
    %v1334 = vadd.f32 %v1333, 1.0
    %v1335 = vrcp.pop %v1334
    %v1336 = vmul.f32 1.0, %v1335
    %v1337 = vtanh.pop %v1317
    %v1338 = vmul.f32 %v1330, %v1220
    %v1339 = vmul.f32 %v1328, %v1337
    %v1340 = vadd.f32 %v1338, %v1339
    %v1341 = vtanh.pop %v1340
    %v1342 = vmul.f32 %v1336, %v1341
    %v1343 = vpack.c.bf16 %v1342, %v1342
    %s1344 = scalar_lea.vmem [#allocation5], 12
    %1345 = vst [vmem:[%s1344] sm:$0xf] %v1343
    %s1346 = smul.u32 4, 4
    %s1347 = smul.addr %s1346, 8
    %s1348 = scalar_lea.vmem [#allocation4], %s1347
    %v1349 = vld [vmem:[%s1348] sm:$0xff]
    %v1350 = vld [vmem:[%s1348 + $0x8] sm:$0xff]
    %v1351 = vld [vmem:[%s1348 + $0x10] sm:$0xff]
    %v1352 = vld [vmem:[%s1348 + $0x18] sm:$0xff]
    %1353 = vmatprep.subr.bf16.mxu0 %v839
    %1354 = vmatpush1.bf16.msra.mxu0 %v838
    %1355 = vmatprep.subr.bf16.mxu0 %v835
    %1356 = vmatpush1.bf16.msra.mxu0 %v834
    %1357 = vmatprep.subr.bf16.mxu0 %v831
    %1358 = vmatpush1.bf16.msra.mxu0 %v830
    %1359 = vmatprep.subr.bf16.mxu0 %v827
    %1360 = vmatpush1.bf16.msra.mxu0 %v826
    %1361 = vmatprep.subr.bf16.mxu0 %v823
    %1362 = vmatpush1.bf16.msra.mxu0 %v822
    %1363 = vmatprep.subr.bf16.mxu0 %v819
    %1364 = vmatpush1.bf16.msra.mxu0 %v818
    %1365 = vmatprep.subr.bf16.mxu0 %v815
    %1366 = vmatpush1.bf16.msra.mxu0 %v814
    %1367 = vmatprep.subr.bf16.mxu0 %v811
    %1368 = vmatpush1.bf16.msra.mxu0 %v810
    %1369 = vmatprep.subr.bf16.mxu0 0
    %1370 = vmatpush2.bf16.msra.mxu0 0
    %1371 = vmatprep.subr.bf16.mxu0 0
    %1372 = vmatpush2.bf16.msra.mxu0 0
    %1373 = vmatprep.subr.bf16.mxu0 0
    %1374 = vmatpush2.bf16.msra.mxu0 0
    %1375 = vmatprep.subr.bf16.mxu0 0
    %1376 = vmatpush2.bf16.msra.mxu0 0
    %1377 = vmatprep.subr.bf16.mxu0 0
    %1378 = vmatpush2.bf16.msra.mxu0 0
    %1379 = vmatprep.subr.bf16.mxu0 0
    %1380 = vmatpush2.bf16.msra.mxu0 0
    %1381 = vmatprep.subr.bf16.mxu0 0
    %1382 = vmatpush2.bf16.msra.mxu0 0
    %1383 = vmatprep.subr.bf16.mxu0 0
    %1384 = vmatpush2.bf16.msra.mxu0 0
    %1385 = vmatprep.mubr.bf16.mxu0 0
    %1386 = vmatmul.mubr.bf16.gmra.mxu0 %v1343
    %v1387 = vpop.f32.mrf.mxu0
    %v1388 = vadd.f32 0.0, %v1387
    %v1389 = vpop.f32.mrf.mxu0
    %v1390 = vadd.f32 0.0, %v1389
    %v1391 = vpop.f32.mrf.mxu0
    %v1392 = vpop.f32.mrf.mxu0
    %1393 = vdwg.mxu0
    %1394 = vmatprep.subr.bf16.mxu0 %v841
    %1395 = vmatpush1.bf16.msra.mxu0 %v840
    %1396 = vmatprep.subr.bf16.mxu0 %v837
    %1397 = vmatpush1.bf16.msra.mxu0 %v836
    %1398 = vmatprep.subr.bf16.mxu0 %v833
    %1399 = vmatpush1.bf16.msra.mxu0 %v832
    %1400 = vmatprep.subr.bf16.mxu0 %v829
    %1401 = vmatpush1.bf16.msra.mxu0 %v828
    %1402 = vmatprep.subr.bf16.mxu0 %v825
    %1403 = vmatpush1.bf16.msra.mxu0 %v824
    %1404 = vmatprep.subr.bf16.mxu0 %v821
    %1405 = vmatpush1.bf16.msra.mxu0 %v820
    %1406 = vmatprep.subr.bf16.mxu0 %v817
    %1407 = vmatpush1.bf16.msra.mxu0 %v816
    %1408 = vmatprep.subr.bf16.mxu0 %v813
    %1409 = vmatpush1.bf16.msra.mxu0 %v812
    %1410 = vmatprep.subr.bf16.mxu0 0
    %1411 = vmatpush2.bf16.msra.mxu0 0
    %1412 = vmatprep.subr.bf16.mxu0 0
    %1413 = vmatpush2.bf16.msra.mxu0 0
    %1414 = vmatprep.subr.bf16.mxu0 0
    %1415 = vmatpush2.bf16.msra.mxu0 0
    %1416 = vmatprep.subr.bf16.mxu0 0
    %1417 = vmatpush2.bf16.msra.mxu0 0
    %1418 = vmatprep.subr.bf16.mxu0 0
    %1419 = vmatpush2.bf16.msra.mxu0 0
    %1420 = vmatprep.subr.bf16.mxu0 0
    %1421 = vmatpush2.bf16.msra.mxu0 0
    %1422 = vmatprep.subr.bf16.mxu0 0
    %1423 = vmatpush2.bf16.msra.mxu0 0
    %1424 = vmatprep.subr.bf16.mxu0 0
    %1425 = vmatpush2.bf16.msra.mxu0 0
    %1426 = vmatprep.mubr.bf16.mxu0 0
    %1427 = vmatmul.mubr.bf16.gmra.mxu0 %v1343
    %v1428 = vpop.f32.mrf.mxu0
    %v1429 = vadd.f32 0.0, %v1428
    %v1430 = vpop.f32.mrf.mxu0
    %v1431 = vadd.f32 0.0, %v1430
    %v1432 = vpop.f32.mrf.mxu0
    %v1433 = vpop.f32.mrf.mxu0
    %1434 = vdwg.mxu0
    %v1435 = vadd.f32 %v1349, %v1388
    %v1436 = vadd.f32 %v1350, %v1390
    %v1437 = vadd.f32 %v1351, %v1429
    %v1438 = vadd.f32 %v1352, %v1431
    %v1439 = vxor.u32 %v1435, 2147483648
    %v1440 = vxor.u32 %v1436, 2147483648
    %v1441 = vmul.f32 %v1439, 1.442695
    %v1442 = vpow.pop %v1441
    %v1443 = vmul.f32 %v1440, 1.442695
    %v1444 = vpow.pop %v1443
    %v1445 = vadd.f32 %v1442, 1.0
    %v1446 = vadd.f32 %v1444, 1.0
    %v1447 = vrcp.pop %v1445
    %v1448 = vmul.f32 1.0, %v1447
    %v1449 = vrcp.pop %v1446
    %v1450 = vmul.f32 1.0, %v1449
    %v1451 = vxor.u32 %v1438, 2147483648
    %v1452 = vmul.f32 %v1451, 1.442695
    %v1453 = vpow.pop %v1452
    %v1454 = vadd.f32 %v1453, 1.0
    %v1455 = vrcp.pop %v1454
    %v1456 = vmul.f32 1.0, %v1455
    %v1457 = vtanh.pop %v1437
    %v1458 = vmul.f32 %v1450, %v1340
    %v1459 = vmul.f32 %v1448, %v1457
    %v1460 = vadd.f32 %v1458, %v1459
    %v1461 = vtanh.pop %v1460
    %v1462 = vmul.f32 %v1456, %v1461
    %v1463 = vpack.c.bf16 %v1462, %v1462
    %s1464 = scalar_lea.vmem [#allocation5], 16
    %1465 = vst [vmem:[%s1464] sm:$0xf] %v1463
    %s1466 = smul.u32 5, 4
    %s1467 = smul.addr %s1466, 8
    %s1468 = scalar_lea.vmem [#allocation4], %s1467
    %v1469 = vld [vmem:[%s1468] sm:$0xff]
    %v1470 = vld [vmem:[%s1468 + $0x8] sm:$0xff]
    %v1471 = vld [vmem:[%s1468 + $0x10] sm:$0xff]
    %v1472 = vld [vmem:[%s1468 + $0x18] sm:$0xff]
    %1473 = vmatprep.subr.bf16.mxu0 %v839
    %1474 = vmatpush1.bf16.msra.mxu0 %v838
    %1475 = vmatprep.subr.bf16.mxu0 %v835
    %1476 = vmatpush1.bf16.msra.mxu0 %v834
    %1477 = vmatprep.subr.bf16.mxu0 %v831
    %1478 = vmatpush1.bf16.msra.mxu0 %v830
    %1479 = vmatprep.subr.bf16.mxu0 %v827
    %1480 = vmatpush1.bf16.msra.mxu0 %v826
    %1481 = vmatprep.subr.bf16.mxu0 %v823
    %1482 = vmatpush1.bf16.msra.mxu0 %v822
    %1483 = vmatprep.subr.bf16.mxu0 %v819
    %1484 = vmatpush1.bf16.msra.mxu0 %v818
    %1485 = vmatprep.subr.bf16.mxu0 %v815
    %1486 = vmatpush1.bf16.msra.mxu0 %v814
    %1487 = vmatprep.subr.bf16.mxu0 %v811
    %1488 = vmatpush1.bf16.msra.mxu0 %v810
    %1489 = vmatprep.subr.bf16.mxu0 0
    %1490 = vmatpush2.bf16.msra.mxu0 0
    %1491 = vmatprep.subr.bf16.mxu0 0
    %1492 = vmatpush2.bf16.msra.mxu0 0
    %1493 = vmatprep.subr.bf16.mxu0 0
    %1494 = vmatpush2.bf16.msra.mxu0 0
    %1495 = vmatprep.subr.bf16.mxu0 0
    %1496 = vmatpush2.bf16.msra.mxu0 0
    %1497 = vmatprep.subr.bf16.mxu0 0
    %1498 = vmatpush2.bf16.msra.mxu0 0
    %1499 = vmatprep.subr.bf16.mxu0 0
    %1500 = vmatpush2.bf16.msra.mxu0 0
    %1501 = vmatprep.subr.bf16.mxu0 0
    %1502 = vmatpush2.bf16.msra.mxu0 0
    %1503 = vmatprep.subr.bf16.mxu0 0
    %1504 = vmatpush2.bf16.msra.mxu0 0
    %1505 = vmatprep.mubr.bf16.mxu0 0
    %1506 = vmatmul.mubr.bf16.gmra.mxu0 %v1463
    %v1507 = vpop.f32.mrf.mxu0
    %v1508 = vadd.f32 0.0, %v1507
    %v1509 = vpop.f32.mrf.mxu0
    %v1510 = vadd.f32 0.0, %v1509
    %v1511 = vpop.f32.mrf.mxu0
    %v1512 = vpop.f32.mrf.mxu0
    %1513 = vdwg.mxu0
    %1514 = vmatprep.subr.bf16.mxu0 %v841
    %1515 = vmatpush1.bf16.msra.mxu0 %v840
    %1516 = vmatprep.subr.bf16.mxu0 %v837
    %1517 = vmatpush1.bf16.msra.mxu0 %v836
    %1518 = vmatprep.subr.bf16.mxu0 %v833
    %1519 = vmatpush1.bf16.msra.mxu0 %v832
    %1520 = vmatprep.subr.bf16.mxu0 %v829
    %1521 = vmatpush1.bf16.msra.mxu0 %v828
    %1522 = vmatprep.subr.bf16.mxu0 %v825
    %1523 = vmatpush1.bf16.msra.mxu0 %v824
    %1524 = vmatprep.subr.bf16.mxu0 %v821
    %1525 = vmatpush1.bf16.msra.mxu0 %v820
    %1526 = vmatprep.subr.bf16.mxu0 %v817
    %1527 = vmatpush1.bf16.msra.mxu0 %v816
    %1528 = vmatprep.subr.bf16.mxu0 %v813
    %1529 = vmatpush1.bf16.msra.mxu0 %v812
    %1530 = vmatprep.subr.bf16.mxu0 0
    %1531 = vmatpush2.bf16.msra.mxu0 0
    %1532 = vmatprep.subr.bf16.mxu0 0
    %1533 = vmatpush2.bf16.msra.mxu0 0
    %1534 = vmatprep.subr.bf16.mxu0 0
    %1535 = vmatpush2.bf16.msra.mxu0 0
    %1536 = vmatprep.subr.bf16.mxu0 0
    %1537 = vmatpush2.bf16.msra.mxu0 0
    %1538 = vmatprep.subr.bf16.mxu0 0
    %1539 = vmatpush2.bf16.msra.mxu0 0
    %1540 = vmatprep.subr.bf16.mxu0 0
    %1541 = vmatpush2.bf16.msra.mxu0 0
    %1542 = vmatprep.subr.bf16.mxu0 0
    %1543 = vmatpush2.bf16.msra.mxu0 0
    %1544 = vmatprep.subr.bf16.mxu0 0
    %1545 = vmatpush2.bf16.msra.mxu0 0
    %1546 = vmatprep.mubr.bf16.mxu0 0
    %1547 = vmatmul.mubr.bf16.gmra.mxu0 %v1463
    %v1548 = vpop.f32.mrf.mxu0
    %v1549 = vadd.f32 0.0, %v1548
    %v1550 = vpop.f32.mrf.mxu0
    %v1551 = vadd.f32 0.0, %v1550
    %v1552 = vpop.f32.mrf.mxu0
    %v1553 = vpop.f32.mrf.mxu0
    %1554 = vdwg.mxu0
    %v1555 = vadd.f32 %v1469, %v1508
    %v1556 = vadd.f32 %v1470, %v1510
    %v1557 = vadd.f32 %v1471, %v1549
    %v1558 = vadd.f32 %v1472, %v1551
    %v1559 = vxor.u32 %v1555, 2147483648
    %v1560 = vxor.u32 %v1556, 2147483648
    %v1561 = vmul.f32 %v1559, 1.442695
    %v1562 = vpow.pop %v1561
    %v1563 = vmul.f32 %v1560, 1.442695
    %v1564 = vpow.pop %v1563
    %v1565 = vadd.f32 %v1562, 1.0
    %v1566 = vadd.f32 %v1564, 1.0
    %v1567 = vrcp.pop %v1565
    %v1568 = vmul.f32 1.0, %v1567
    %v1569 = vrcp.pop %v1566
    %v1570 = vmul.f32 1.0, %v1569
    %v1571 = vxor.u32 %v1558, 2147483648
    %v1572 = vmul.f32 %v1571, 1.442695
    %v1573 = vpow.pop %v1572
    %v1574 = vadd.f32 %v1573, 1.0
    %v1575 = vrcp.pop %v1574
    %v1576 = vmul.f32 1.0, %v1575
    %v1577 = vtanh.pop %v1557
    %v1578 = vmul.f32 %v1570, %v1460
    %v1579 = vmul.f32 %v1568, %v1577
    %v1580 = vadd.f32 %v1578, %v1579
    %v1581 = vtanh.pop %v1580
    %v1582 = vmul.f32 %v1576, %v1581
    %v1583 = vpack.c.bf16 %v1582, %v1582
    %s1584 = scalar_lea.vmem [#allocation5], 20
    %1585 = vst [vmem:[%s1584] sm:$0xf] %v1583
    %s1586 = smul.u32 6, 4
    %s1587 = smul.addr %s1586, 8
    %s1588 = scalar_lea.vmem [#allocation4], %s1587
    %v1589 = vld [vmem:[%s1588] sm:$0xff]
    %v1590 = vld [vmem:[%s1588 + $0x8] sm:$0xff]
    %v1591 = vld [vmem:[%s1588 + $0x10] sm:$0xff]
    %v1592 = vld [vmem:[%s1588 + $0x18] sm:$0xff]
    %1593 = vmatprep.subr.bf16.mxu0 %v839
    %1594 = vmatpush1.bf16.msra.mxu0 %v838
    %1595 = vmatprep.subr.bf16.mxu0 %v835
    %1596 = vmatpush1.bf16.msra.mxu0 %v834
    %1597 = vmatprep.subr.bf16.mxu0 %v831
    %1598 = vmatpush1.bf16.msra.mxu0 %v830
    %1599 = vmatprep.subr.bf16.mxu0 %v827
    %1600 = vmatpush1.bf16.msra.mxu0 %v826
    %1601 = vmatprep.subr.bf16.mxu0 %v823
    %1602 = vmatpush1.bf16.msra.mxu0 %v822
    %1603 = vmatprep.subr.bf16.mxu0 %v819
    %1604 = vmatpush1.bf16.msra.mxu0 %v818
    %1605 = vmatprep.subr.bf16.mxu0 %v815
    %1606 = vmatpush1.bf16.msra.mxu0 %v814
    %1607 = vmatprep.subr.bf16.mxu0 %v811
    %1608 = vmatpush1.bf16.msra.mxu0 %v810
    %1609 = vmatprep.subr.bf16.mxu0 0
    %1610 = vmatpush2.bf16.msra.mxu0 0
    %1611 = vmatprep.subr.bf16.mxu0 0
    %1612 = vmatpush2.bf16.msra.mxu0 0
    %1613 = vmatprep.subr.bf16.mxu0 0
    %1614 = vmatpush2.bf16.msra.mxu0 0
    %1615 = vmatprep.subr.bf16.mxu0 0
    %1616 = vmatpush2.bf16.msra.mxu0 0
    %1617 = vmatprep.subr.bf16.mxu0 0
    %1618 = vmatpush2.bf16.msra.mxu0 0
    %1619 = vmatprep.subr.bf16.mxu0 0
    %1620 = vmatpush2.bf16.msra.mxu0 0
    %1621 = vmatprep.subr.bf16.mxu0 0
    %1622 = vmatpush2.bf16.msra.mxu0 0
    %1623 = vmatprep.subr.bf16.mxu0 0
    %1624 = vmatpush2.bf16.msra.mxu0 0
    %1625 = vmatprep.mubr.bf16.mxu0 0
    %1626 = vmatmul.mubr.bf16.gmra.mxu0 %v1583
    %v1627 = vpop.f32.mrf.mxu0
    %v1628 = vadd.f32 0.0, %v1627
    %v1629 = vpop.f32.mrf.mxu0
    %v1630 = vadd.f32 0.0, %v1629
    %v1631 = vpop.f32.mrf.mxu0
    %v1632 = vpop.f32.mrf.mxu0
    %1633 = vdwg.mxu0
    %1634 = vmatprep.subr.bf16.mxu0 %v841
    %1635 = vmatpush1.bf16.msra.mxu0 %v840
    %1636 = vmatprep.subr.bf16.mxu0 %v837
    %1637 = vmatpush1.bf16.msra.mxu0 %v836
    %1638 = vmatprep.subr.bf16.mxu0 %v833
    %1639 = vmatpush1.bf16.msra.mxu0 %v832
    %1640 = vmatprep.subr.bf16.mxu0 %v829
    %1641 = vmatpush1.bf16.msra.mxu0 %v828
    %1642 = vmatprep.subr.bf16.mxu0 %v825
    %1643 = vmatpush1.bf16.msra.mxu0 %v824
    %1644 = vmatprep.subr.bf16.mxu0 %v821
    %1645 = vmatpush1.bf16.msra.mxu0 %v820
    %1646 = vmatprep.subr.bf16.mxu0 %v817
    %1647 = vmatpush1.bf16.msra.mxu0 %v816
    %1648 = vmatprep.subr.bf16.mxu0 %v813
    %1649 = vmatpush1.bf16.msra.mxu0 %v812
    %1650 = vmatprep.subr.bf16.mxu0 0
    %1651 = vmatpush2.bf16.msra.mxu0 0
    %1652 = vmatprep.subr.bf16.mxu0 0
    %1653 = vmatpush2.bf16.msra.mxu0 0
    %1654 = vmatprep.subr.bf16.mxu0 0
    %1655 = vmatpush2.bf16.msra.mxu0 0
    %1656 = vmatprep.subr.bf16.mxu0 0
    %1657 = vmatpush2.bf16.msra.mxu0 0
    %1658 = vmatprep.subr.bf16.mxu0 0
    %1659 = vmatpush2.bf16.msra.mxu0 0
    %1660 = vmatprep.subr.bf16.mxu0 0
    %1661 = vmatpush2.bf16.msra.mxu0 0
    %1662 = vmatprep.subr.bf16.mxu0 0
    %1663 = vmatpush2.bf16.msra.mxu0 0
    %1664 = vmatprep.subr.bf16.mxu0 0
    %1665 = vmatpush2.bf16.msra.mxu0 0
    %1666 = vmatprep.mubr.bf16.mxu0 0
    %1667 = vmatmul.mubr.bf16.gmra.mxu0 %v1583
    %v1668 = vpop.f32.mrf.mxu0
    %v1669 = vadd.f32 0.0, %v1668
    %v1670 = vpop.f32.mrf.mxu0
    %v1671 = vadd.f32 0.0, %v1670
    %v1672 = vpop.f32.mrf.mxu0
    %v1673 = vpop.f32.mrf.mxu0
    %1674 = vdwg.mxu0
    %v1675 = vadd.f32 %v1589, %v1628
    %v1676 = vadd.f32 %v1590, %v1630
    %v1677 = vadd.f32 %v1591, %v1669
    %v1678 = vadd.f32 %v1592, %v1671
    %v1679 = vxor.u32 %v1675, 2147483648
    %v1680 = vxor.u32 %v1676, 2147483648
    %v1681 = vmul.f32 %v1679, 1.442695
    %v1682 = vpow.pop %v1681
    %v1683 = vmul.f32 %v1680, 1.442695
    %v1684 = vpow.pop %v1683
    %v1685 = vadd.f32 %v1682, 1.0
    %v1686 = vadd.f32 %v1684, 1.0
    %v1687 = vrcp.pop %v1685
    %v1688 = vmul.f32 1.0, %v1687
    %v1689 = vrcp.pop %v1686
    %v1690 = vmul.f32 1.0, %v1689
    %v1691 = vxor.u32 %v1678, 2147483648
    %v1692 = vmul.f32 %v1691, 1.442695
    %v1693 = vpow.pop %v1692
    %v1694 = vadd.f32 %v1693, 1.0
    %v1695 = vrcp.pop %v1694
    %v1696 = vmul.f32 1.0, %v1695
    %v1697 = vtanh.pop %v1677
    %v1698 = vmul.f32 %v1690, %v1580
    %v1699 = vmul.f32 %v1688, %v1697
    %v1700 = vadd.f32 %v1698, %v1699
    %v1701 = vtanh.pop %v1700
    %v1702 = vmul.f32 %v1696, %v1701
    %v1703 = vpack.c.bf16 %v1702, %v1702
    %s1704 = scalar_lea.vmem [#allocation5], 24
    %1705 = vst [vmem:[%s1704] sm:$0xf] %v1703
    %s1706 = smul.u32 7, 4
    %s1707 = smul.addr %s1706, 8
    %s1708 = scalar_lea.vmem [#allocation4], %s1707
    %v1709 = vld [vmem:[%s1708] sm:$0xff]
    %v1710 = vld [vmem:[%s1708 + $0x8] sm:$0xff]
    %v1711 = vld [vmem:[%s1708 + $0x10] sm:$0xff]
    %v1712 = vld [vmem:[%s1708 + $0x18] sm:$0xff]
    %1713 = vmatprep.subr.bf16.mxu0 %v839
    %1714 = vmatpush1.bf16.msra.mxu0 %v838
    %1715 = vmatprep.subr.bf16.mxu0 %v835
    %1716 = vmatpush1.bf16.msra.mxu0 %v834
    %1717 = vmatprep.subr.bf16.mxu0 %v831
    %1718 = vmatpush1.bf16.msra.mxu0 %v830
    %1719 = vmatprep.subr.bf16.mxu0 %v827
    %1720 = vmatpush1.bf16.msra.mxu0 %v826
    %1721 = vmatprep.subr.bf16.mxu0 %v823
    %1722 = vmatpush1.bf16.msra.mxu0 %v822
    %1723 = vmatprep.subr.bf16.mxu0 %v819
    %1724 = vmatpush1.bf16.msra.mxu0 %v818
    %1725 = vmatprep.subr.bf16.mxu0 %v815
    %1726 = vmatpush1.bf16.msra.mxu0 %v814
    %1727 = vmatprep.subr.bf16.mxu0 %v811
    %1728 = vmatpush1.bf16.msra.mxu0 %v810
    %1729 = vmatprep.subr.bf16.mxu0 0
    %1730 = vmatpush2.bf16.msra.mxu0 0
    %1731 = vmatprep.subr.bf16.mxu0 0
    %1732 = vmatpush2.bf16.msra.mxu0 0
    %1733 = vmatprep.subr.bf16.mxu0 0
    %1734 = vmatpush2.bf16.msra.mxu0 0
    %1735 = vmatprep.subr.bf16.mxu0 0
    %1736 = vmatpush2.bf16.msra.mxu0 0
    %1737 = vmatprep.subr.bf16.mxu0 0
    %1738 = vmatpush2.bf16.msra.mxu0 0
    %1739 = vmatprep.subr.bf16.mxu0 0
    %1740 = vmatpush2.bf16.msra.mxu0 0
    %1741 = vmatprep.subr.bf16.mxu0 0
    %1742 = vmatpush2.bf16.msra.mxu0 0
    %1743 = vmatprep.subr.bf16.mxu0 0
    %1744 = vmatpush2.bf16.msra.mxu0 0
    %1745 = vmatprep.mubr.bf16.mxu0 0
    %1746 = vmatmul.mubr.bf16.gmra.mxu0 %v1703
    %v1747 = vpop.f32.mrf.mxu0
    %v1748 = vadd.f32 0.0, %v1747
    %v1749 = vpop.f32.mrf.mxu0
    %v1750 = vadd.f32 0.0, %v1749
    %v1751 = vpop.f32.mrf.mxu0
    %v1752 = vpop.f32.mrf.mxu0
    %1753 = vdwg.mxu0
    %1754 = vmatprep.subr.bf16.mxu0 %v841
    %1755 = vmatpush1.bf16.msra.mxu0 %v840
    %1756 = vmatprep.subr.bf16.mxu0 %v837
    %1757 = vmatpush1.bf16.msra.mxu0 %v836
    %1758 = vmatprep.subr.bf16.mxu0 %v833
    %1759 = vmatpush1.bf16.msra.mxu0 %v832
    %1760 = vmatprep.subr.bf16.mxu0 %v829
    %1761 = vmatpush1.bf16.msra.mxu0 %v828
    %1762 = vmatprep.subr.bf16.mxu0 %v825
    %1763 = vmatpush1.bf16.msra.mxu0 %v824
    %1764 = vmatprep.subr.bf16.mxu0 %v821
    %1765 = vmatpush1.bf16.msra.mxu0 %v820
    %1766 = vmatprep.subr.bf16.mxu0 %v817
    %1767 = vmatpush1.bf16.msra.mxu0 %v816
    %1768 = vmatprep.subr.bf16.mxu0 %v813
    %1769 = vmatpush1.bf16.msra.mxu0 %v812
    %1770 = vmatprep.subr.bf16.mxu0 0
    %1771 = vmatpush2.bf16.msra.mxu0 0
    %1772 = vmatprep.subr.bf16.mxu0 0
    %1773 = vmatpush2.bf16.msra.mxu0 0
    %1774 = vmatprep.subr.bf16.mxu0 0
    %1775 = vmatpush2.bf16.msra.mxu0 0
    %1776 = vmatprep.subr.bf16.mxu0 0
    %1777 = vmatpush2.bf16.msra.mxu0 0
    %1778 = vmatprep.subr.bf16.mxu0 0
    %1779 = vmatpush2.bf16.msra.mxu0 0
    %1780 = vmatprep.subr.bf16.mxu0 0
    %1781 = vmatpush2.bf16.msra.mxu0 0
    %1782 = vmatprep.subr.bf16.mxu0 0
    %1783 = vmatpush2.bf16.msra.mxu0 0
    %1784 = vmatprep.subr.bf16.mxu0 0
    %1785 = vmatpush2.bf16.msra.mxu0 0
    %1786 = vmatprep.mubr.bf16.mxu0 0
    %1787 = vmatmul.mubr.bf16.gmra.mxu0 %v1703
    %v1788 = vpop.f32.mrf.mxu0
    %v1789 = vadd.f32 0.0, %v1788
    %v1790 = vpop.f32.mrf.mxu0
    %v1791 = vadd.f32 0.0, %v1790
    %v1792 = vpop.f32.mrf.mxu0
    %v1793 = vpop.f32.mrf.mxu0
    %1794 = vdwg.mxu0
    %v1795 = vadd.f32 %v1709, %v1748
    %v1796 = vadd.f32 %v1710, %v1750
    %v1797 = vadd.f32 %v1711, %v1789
    %v1798 = vadd.f32 %v1712, %v1791
    %v1799 = vxor.u32 %v1795, 2147483648
    %v1800 = vxor.u32 %v1796, 2147483648
    %v1801 = vmul.f32 %v1799, 1.442695
    %v1802 = vpow.pop %v1801
    %v1803 = vmul.f32 %v1800, 1.442695
    %v1804 = vpow.pop %v1803
    %v1805 = vadd.f32 %v1802, 1.0
    %v1806 = vadd.f32 %v1804, 1.0
    %v1807 = vrcp.pop %v1805
    %v1808 = vmul.f32 1.0, %v1807
    %v1809 = vrcp.pop %v1806
    %v1810 = vmul.f32 1.0, %v1809
    %v1811 = vxor.u32 %v1798, 2147483648
    %v1812 = vmul.f32 %v1811, 1.442695
    %v1813 = vpow.pop %v1812
    %v1814 = vadd.f32 %v1813, 1.0
    %v1815 = vrcp.pop %v1814
    %v1816 = vmul.f32 1.0, %v1815
    %v1817 = vtanh.pop %v1797
    %v1818 = vmul.f32 %v1810, %v1700
    %v1819 = vmul.f32 %v1808, %v1817
    %v1820 = vadd.f32 %v1818, %v1819
    %v1821 = vtanh.pop %v1820
    %v1822 = vmul.f32 %v1816, %v1821
    %v1823 = vpack.c.bf16 %v1822, %v1822
    %s1824 = scalar_lea.vmem [#allocation5], 28
    %1825 = vst [vmem:[%s1824] sm:$0xf] %v1823
    %1826 = vst [vmem:[#allocation6] sm:$0xf] %v1823
    %1827 = vst [vmem:[#allocation7] sm:$0xff] %v1820
  $region95: #{type_predictor_forward.1} parent=0 // pred_fallthru
    _
  %v1828 = vld [vmem:[#allocation5] sm:$0xf]
  %v1829 = vld [vmem:[#allocation5 + $0x4] sm:$0xf]
  %v1830 = vld [vmem:[#allocation5 + $0x8] sm:$0xf]
  %v1831 = vld [vmem:[#allocation5 + $0xc] sm:$0xf]
  %v1832 = vld [vmem:[#allocation5 + $0x10] sm:$0xf]
  %v1833 = vld [vmem:[#allocation5 + $0x14] sm:$0xf]
  %v1834 = vld [vmem:[#allocation5 + $0x18] sm:$0xf]
  %v1835 = vld [vmem:[#allocation5 + $0x1c] sm:$0xf]
  %v1836 = vld [vmem:[%s4] sm:$0xf]
  %v1837 = vld [vmem:[%s4 + $0x4] sm:$0xf]
  %v1838 = vld [vmem:[%s4 + $0x8] sm:$0xf]
  %v1839 = vld [vmem:[%s4 + $0xc] sm:$0xf]
  %v1840 = vld [vmem:[%s4 + $0x10] sm:$0xf]
  %v1841 = vld [vmem:[%s4 + $0x14] sm:$0xf]
  %v1842 = vld [vmem:[%s4 + $0x18] sm:$0xf]
  %v1843 = vld [vmem:[%s4 + $0x1c] sm:$0xf]
  %v1844 = vld [vmem:[%s4 + $0x20] sm:$0xf]
  %v1845 = vld [vmem:[%s4 + $0x24] sm:$0xf]
  %v1846 = vld [vmem:[%s4 + $0x28] sm:$0xf]
  %v1847 = vld [vmem:[%s4 + $0x2c] sm:$0xf]
  %v1848 = vld [vmem:[%s4 + $0x30] sm:$0xf]
  %v1849 = vld [vmem:[%s4 + $0x34] sm:$0xf]
  %v1850 = vld [vmem:[%s4 + $0x38] sm:$0xf]
  %v1851 = vld [vmem:[%s4 + $0x3c] sm:$0xf]
  %v1852 = vld [vmem:[%s5] sm:$0x1]
  %v1854 = vlaneseq
  %v1855 = vshrl.u32 %v1854, 7
  %v1856 = vsub.s32 0, %v1855
  %v1857 = vrot.slane %v1852, %v1856
  %v1867 = vunpack.c.l.b16 %v1828
  %v1868 = vunpack.c.l.b16 %v1829
  %v1869 = vunpack.c.l.b16 %v1830
  %v1870 = vunpack.c.l.b16 %v1831
  %v1871 = vunpack.c.l.b16 %v1832
  %v1872 = vunpack.c.l.b16 %v1833
  %v1873 = vunpack.c.l.b16 %v1834
  %v1874 = vunpack.c.l.b16 %v1835
  %v1875 = vpack.c.b16 %v1868, %v1867
  %v1876 = vpack.c.b16 %v1870, %v1869
  %v1877 = vpack.c.b16 %v1872, %v1871
  %v1878 = vpack.c.b16 %v1874, %v1873
  %v1899 = vunpack.c.l.b16 %v1836
  %v1900 = vunpack.c.l.b16 %v1837
  %v1901 = vunpack.c.l.b16 %v1838
  %v1902 = vunpack.c.l.b16 %v1839
  %v1903 = vunpack.c.l.b16 %v1840
  %v1904 = vunpack.c.l.b16 %v1841
  %v1905 = vunpack.c.l.b16 %v1842
  %v1906 = vunpack.c.l.b16 %v1843
  %v1907 = vunpack.c.l.b16 %v1844
  %v1908 = vunpack.c.l.b16 %v1845
  %v1909 = vunpack.c.l.b16 %v1846
  %v1910 = vunpack.c.l.b16 %v1847
  %v1911 = vunpack.c.l.b16 %v1848
  %v1912 = vunpack.c.l.b16 %v1849
  %v1913 = vunpack.c.l.b16 %v1850
  %v1914 = vunpack.c.l.b16 %v1851
  %v1915 = vpack.c.b16 %v1900, %v1899
  %v1916 = vpack.c.b16 %v1902, %v1901
  %v1917 = vpack.c.b16 %v1904, %v1903
  %v1918 = vpack.c.b16 %v1906, %v1905
  %v1919 = vpack.c.b16 %v1908, %v1907
  %v1920 = vpack.c.b16 %v1910, %v1909
  %v1921 = vpack.c.b16 %v1912, %v1911
  %v1922 = vpack.c.b16 %v1914, %v1913
  %1931 = vmatprep.subr.bf16.mxu0 0
  %1932 = vmatpush1.bf16.msra.mxu0 %v1922
  %1933 = vmatprep.subr.bf16.mxu0 0
  %1934 = vmatpush1.bf16.msra.mxu0 %v1921
  %1935 = vmatprep.subr.bf16.mxu0 0
  %1936 = vmatpush1.bf16.msra.mxu0 %v1920
  %1937 = vmatprep.subr.bf16.mxu0 0
  %1938 = vmatpush1.bf16.msra.mxu0 %v1919
  %1939 = vmatprep.subr.bf16.mxu0 0
  %1940 = vmatpush1.bf16.msra.mxu0 %v1918
  %1941 = vmatprep.subr.bf16.mxu0 0
  %1942 = vmatpush1.bf16.msra.mxu0 %v1917
  %1943 = vmatprep.subr.bf16.mxu0 0
  %1944 = vmatpush1.bf16.msra.mxu0 %v1916
  %1945 = vmatprep.subr.bf16.mxu0 0
  %1946 = vmatpush1.bf16.msra.mxu0 %v1915
  %1947 = vmatprep.subr.bf16.mxu0 0
  %1948 = vmatpush2.bf16.msra.mxu0 0
  %1949 = vmatprep.subr.bf16.mxu0 0
  %1950 = vmatpush2.bf16.msra.mxu0 0
  %1951 = vmatprep.subr.bf16.mxu0 0
  %1952 = vmatpush2.bf16.msra.mxu0 0
  %1953 = vmatprep.subr.bf16.mxu0 0
  %1954 = vmatpush2.bf16.msra.mxu0 0
  %1955 = vmatprep.subr.bf16.mxu0 0
  %1956 = vmatpush2.bf16.msra.mxu0 0
  %1957 = vmatprep.subr.bf16.mxu0 0
  %1958 = vmatpush2.bf16.msra.mxu0 0
  %1959 = vmatprep.subr.bf16.mxu0 0
  %1960 = vmatpush2.bf16.msra.mxu0 0
  %1961 = vmatprep.subr.bf16.mxu0 0
  %1962 = vmatpush2.bf16.msra.mxu0 0
  %1963 = vmatprep.mubr.bf16.mxu0 0
  %1964 = vmatmul.mubr.bf16.gmra.mxu0 %v1875
  %v1965 = vpop.f32.mrf.mxu0
  %v1966 = vadd.f32 %v1857, %v1965
  %v1967 = vpop.f32.mrf.mxu0
  %v1968 = vpop.f32.mrf.mxu0
  %v1969 = vadd.f32 %v1857, %v1968
  %v1970 = vpop.f32.mrf.mxu0
  %1971 = vmatprep.mubr.bf16.mxu0 0
  %1972 = vmatmul.mubr.bf16.gmra.mxu0 %v1876
  %v1973 = vpop.f32.mrf.mxu0
  %v1974 = vadd.f32 %v1857, %v1973
  %v1975 = vpop.f32.mrf.mxu0
  %v1976 = vpop.f32.mrf.mxu0
  %v1977 = vadd.f32 %v1857, %v1976
  %v1978 = vpop.f32.mrf.mxu0
  %1979 = vmatprep.mubr.bf16.mxu0 0
  %1980 = vmatmul.mubr.bf16.gmra.mxu0 %v1877
  %v1981 = vpop.f32.mrf.mxu0
  %v1982 = vadd.f32 %v1857, %v1981
  %v1983 = vpop.f32.mrf.mxu0
  %v1984 = vpop.f32.mrf.mxu0
  %v1985 = vadd.f32 %v1857, %v1984
  %v1986 = vpop.f32.mrf.mxu0
  %1987 = vmatprep.mubr.bf16.mxu0 0
  %1988 = vmatmul.mubr.bf16.gmra.mxu0 %v1878
  %v1989 = vpop.f32.mrf.mxu0
  %v1990 = vadd.f32 %v1857, %v1989
  %v1991 = vpop.f32.mrf.mxu0
  %v1992 = vpop.f32.mrf.mxu0
  %v1993 = vadd.f32 %v1857, %v1992
  %v1994 = vpop.f32.mrf.mxu0
  %1995 = vdwg.mxu0
  %1996 = vst [vmem:[%s6] sm:$0xff] %v1966
  %1997 = vst [vmem:[%s6 + $0x8] sm:$0xff] %v1969
  %1998 = vst [vmem:[%s6 + $0x10] sm:$0xff] %v1974
  %1999 = vst [vmem:[%s6 + $0x18] sm:$0xff] %v1977
  %2000 = vst [vmem:[%s6 + $0x20] sm:$0xff] %v1982
  %2001 = vst [vmem:[%s6 + $0x28] sm:$0xff] %v1985
  %2002 = vst [vmem:[%s6 + $0x30] sm:$0xff] %v1990
  %2003 = vst [vmem:[%s6 + $0x38] sm:$0xff] %v1993
  // Predicated region
  $region96: #{type_predictor_forward.1} parent=0 // pred_check
    _
  $region97: #{type_predictor_forward.1} parent=0 // pred_check_branch
    %2005 = sbr.rel (0) target = $region99
  $region98: #{type_predictor_forward.1} parent=0 // pred_region
    _
  $region99: #{type_predictor_forward.1} parent=0 // pred_fallthru
    _
  // Predicated region
  $region100: #{type_predictor_forward.1} parent=0 // pred_check
    _
  $region101: #{type_predictor_forward.1} parent=0 // pred_check_branch
    %2007 = sbr.rel (0) target = $region103
  $region102: #{type_predictor_forward.1} parent=0 // pred_region
    _
  $region103: #{type_predictor_forward.1} parent=0 // pred_fallthru
    _

</llo_original>
